<compile_context>
chip_gen: v6e
topology: v6e:2x2x1
jax: 0.10.0
libtpu: 0.0.40
codegen_flags: <defaults>
</compile_context>

<pallas_src>
import jax
import jax.numpy as jnp
from jax import lax
from jax.experimental import pallas as pl
from jax.experimental.pallas import tpu as pltpu


def _make_fused_reconstruct_kernel(H, W, F, C3):
    """conv3x3 -> (conv3x3 -> ReLU -> conv3x3 -> +skip) -> conv3x3, fused.

    Activations are (channels, H*W): channels in sublanes, spatial in lanes.
    Each conv is one (Cout, 9F) @ (9F, HW) MXU matmul; the (9F, HW) im2col operand
    is built from pltpu.roll lane shifts + 0/1 border masks (== SAME zero padding).
    """
    HW = H * W

    def kernel(x_ref, m_ref, w0_ref, b0_ref, w1_ref, b1_ref, w2_ref, b2_ref,
               w3_ref, b3_ref, o_ref):
        # x_ref : (1, F, HW)    one batch element (channels-major, spatial flattened)
        # m_ref : (9, 1, HW)    per-tap validity mask (1.0 inside image, 0.0 at border)
        # wK_ref: (Cout, 9*F)   3x3 taps stacked along the contraction dim
        # bK_ref: (Cout, 1)
        # o_ref : (1, C3, HW)

        def conv3x3(act, w_ref, b_ref):
            # act: (F, HW). Build (9F, HW) im2col operand; one MXU matmul, K = 9F.
            blocks = []
            for k in range(9):
                dyr, dxr = k // 3 - 1, k % 3 - 1
                s = dyr * W + dxr                          # flat lane shift of this tap
                if s == 0:
                    blocks.append(act)                     # center tap: no shift/mask
                else:
                    shifted = pltpu.roll(act, shift=(-s) % HW, axis=1)   # XLU rotate
                    blocks.append(shifted * m_ref[k])      # zero out-of-image reads
            patches = jnp.concatenate(blocks, axis=0)      # (9F, HW), sublane-aligned
            return jnp.dot(w_ref[...], patches,
                           preferred_element_type=jnp.float32) + b_ref[...]

        x = x_ref[0]                                        # (F, HW)
        h0 = conv3x3(x, w0_ref, b0_ref)                     # body[0]
        r = jnp.maximum(conv3x3(h0, w1_ref, b1_ref), 0.0)   # ResBlock conv + ReLU
        h2 = conv3x3(r, w2_ref, b2_ref) + h0                # ResBlock conv + skip
        y = conv3x3(h2, w3_ref, b3_ref)                     # body[2], (C3, HW)
        o_ref[0] = y.astype(o_ref.dtype)                    # lane-dense store

    return kernel


def init_params(key, n_feats, n_colors):
    """Deterministic synthetic parameters for the 4 convs in Reconstruct (HWIO)."""
    shapes = [
        ((3, 3, n_feats, n_feats), (n_feats,)),    # body[0] conv
        ((3, 3, n_feats, n_feats), (n_feats,)),    # ResBlock conv 1
        ((3, 3, n_feats, n_feats), (n_feats,)),    # ResBlock conv 2
        ((3, 3, n_feats, n_colors), (n_colors,)),  # body[2] conv
    ]
    params = []
    for i, (ws, bs) in enumerate(shapes):
        kw, kb = jax.random.split(jax.random.fold_in(key, i))
        fan_in = ws[0] * ws[1] * ws[2]
        bound = 1.0 / jnp.sqrt(fan_in)
        w = jax.random.uniform(kw, ws, jnp.float32, -bound, bound)
        b = jax.random.uniform(kb, bs, jnp.float32, -bound, bound)
        params.append((w, b))
    return params


def _tap_masks(H, W):
    """(9, 1, H*W) f32: 1.0 where the tap's source pixel lies inside the image."""
    HW = H * W
    ids = jnp.arange(HW, dtype=jnp.int32)
    row, col = ids // W, ids % W
    masks = []
    for k in range(9):
        dyr, dxr = k // 3 - 1, k % 3 - 1
        ok = ((row + dyr >= 0) & (row + dyr < H) &
              (col + dxr >= 0) & (col + dxr < W))
        masks.append(ok.astype(jnp.float32).reshape(1, 1, HW))
    return jnp.concatenate(masks, axis=0)


def reconstruct_forward(x_nchw, params):
    """Forward pass of Reconstruct. Input/output NCHW to match the PyTorch module."""
    (w0, b0), (w1, b1), (w2, b2), (w3, b3) = params
    N, Cin, H, W = x_nchw.shape
    F = w0.shape[2]
    C3 = w3.shape[3]
    assert Cin == F
    HW = H * W

    # Free layout glue: NCHW -> (N, C, H*W); HWIO taps -> (Cout, 9*Cin) stacked.
    x = x_nchw.reshape(N, F, HW)
    stack = lambda w: jnp.transpose(w.reshape(9 * w.shape[2], w.shape[3]))
    w0s, w1s, w2s, w3s = stack(w0), stack(w1), stack(w2), stack(w3)
    b0c, b1c, b2c = (b.reshape(F, 1) for b in (b0, b1, b2))
    b3c = b3.reshape(C3, 1)
    taps = _tap_masks(H, W)

    kernel = _make_fused_reconstruct_kernel(H, W, F, C3)

    flops = N * 2 * 9 * F * HW * (3 * F + C3)
    bytes_accessed = 4 * (N * HW * (F + C3) + 9 * HW
                          + 3 * (9 * F * F + F) + 9 * F * C3 + C3)

    out = pl.pallas_call(
        kernel,
        out_shape=jax.ShapeDtypeStruct((N, C3, HW), jnp.float32),
        grid_spec=pltpu.PrefetchScalarGridSpec(
            num_scalar_prefetch=0,
            grid=(N,),
            in_specs=[
                pl.BlockSpec((1, F, HW), lambda n: (n, 0, 0)),   # x (this element)
                pl.BlockSpec((9, 1, HW), lambda n: (0, 0, 0)),   # tap border masks
                pl.BlockSpec((F, 9 * F), lambda n: (0, 0)),      # w0 stacked
                pl.BlockSpec((F, 1), lambda n: (0, 0)),          # b0
                pl.BlockSpec((F, 9 * F), lambda n: (0, 0)),      # w1
                pl.BlockSpec((F, 1), lambda n: (0, 0)),          # b1
                pl.BlockSpec((F, 9 * F), lambda n: (0, 0)),      # w2
                pl.BlockSpec((F, 1), lambda n: (0, 0)),          # b2
                pl.BlockSpec((C3, 9 * F), lambda n: (0, 0)),     # w3 stacked
                pl.BlockSpec((C3, 1), lambda n: (0, 0)),         # b3
            ],
            out_specs=pl.BlockSpec((1, C3, HW), lambda n: (n, 0, 0)),
        ),
        compiler_params=pltpu.CompilerParams(
            dimension_semantics=("parallel",),
            vmem_limit_bytes=64 * 1024 * 1024),
        cost_estimate=pl.CostEstimate(
            flops=flops, transcendentals=0, bytes_accessed=bytes_accessed),
    )(x, taps, w0s, b0c, w1s, b1c, w2s, b2c, w3s, b3c)

    return out.reshape(N, C3, H, W)


def reconstruct_reference(x_nchw, params):
    """Pure-JAX reference (lax.conv) for correctness checking."""
    def conv(x, w, b):
        y = lax.conv_general_dilated(
            x, w, window_strides=(1, 1), padding="SAME",
            dimension_numbers=("NCHW", "HWIO", "NCHW"))
        return y + b[None, :, None, None]

    (w0, b0), (w1, b1), (w2, b2), (w3, b3) = params
    h = conv(x_nchw, w0, b0)
    r = jnp.maximum(conv(h, w1, b1), 0.0)
    h = conv(r, w2, b2) + h
    return conv(h, w3, b3)


if __name__ == "__main__":
    n_feats, n_colors = 16, 3
    N, H, W = 2, 16, 16

    key = jax.random.PRNGKey(0)
    kx, kp = jax.random.split(key)
    x = jax.random.normal(kx, (N, n_feats, H, W), dtype=jnp.float32)
    params = init_params(kp, n_feats, n_colors)

    fwd = jax.jit(reconstruct_forward)
    out = jax.block_until_ready(fwd(x, params))
    ref = jax.block_until_ready(reconstruct_reference(x, params))

    assert out.shape == (N, n_colors, H, W)
    assert jnp.allclose(out, ref, atol=1e-4, rtol=1e-4), "Pallas output mismatch vs reference"

    print("KERNEL_OK")
</pallas_src>

<mosaic_0001>
module attributes {stable_mosaic.version = 11 : i64} {
  func.func @kernel(%arg0: i32, %arg1: memref<1x16x256xf32, #tpu.memory_space<vmem>>, %arg2: memref<9x1x256xf32, #tpu.memory_space<vmem>>, %arg3: memref<16x144xf32, #tpu.memory_space<vmem>>, %arg4: memref<16x1xf32, #tpu.memory_space<vmem>>, %arg5: memref<16x144xf32, #tpu.memory_space<vmem>>, %arg6: memref<16x1xf32, #tpu.memory_space<vmem>>, %arg7: memref<16x144xf32, #tpu.memory_space<vmem>>, %arg8: memref<16x1xf32, #tpu.memory_space<vmem>>, %arg9: memref<3x144xf32, #tpu.memory_space<vmem>>, %arg10: memref<3x1xf32, #tpu.memory_space<vmem>>, %arg11: memref<1x3x256xf32, #tpu.memory_space<vmem>>) attributes {dimension_semantics = [#tpu.dimension_semantics<parallel>], iteration_bounds = array<i64: 2>, scalar_prefetch = 0 : i64, scratch_operands = 0 : i64, tpu.core_type = #tpu.core_type<tc>, window_params = [{transform_indices = @transform_0, window_bounds = array<i64: 1, 16, 256>}, {pipeline_mode = #tpu.pipeline_mode<synchronous>, transform_indices = @transform_1, window_bounds = array<i64: 9, 1, 256>}, {pipeline_mode = #tpu.pipeline_mode<synchronous>, transform_indices = @transform_2, window_bounds = array<i64: 16, 144>}, {pipeline_mode = #tpu.pipeline_mode<synchronous>, transform_indices = @transform_3, window_bounds = array<i64: 16, 1>}, {pipeline_mode = #tpu.pipeline_mode<synchronous>, transform_indices = @transform_4, window_bounds = array<i64: 16, 144>}, {pipeline_mode = #tpu.pipeline_mode<synchronous>, transform_indices = @transform_5, window_bounds = array<i64: 16, 1>}, {pipeline_mode = #tpu.pipeline_mode<synchronous>, transform_indices = @transform_6, window_bounds = array<i64: 16, 144>}, {pipeline_mode = #tpu.pipeline_mode<synchronous>, transform_indices = @transform_7, window_bounds = array<i64: 16, 1>}, {pipeline_mode = #tpu.pipeline_mode<synchronous>, transform_indices = @transform_8, window_bounds = array<i64: 3, 144>}, {pipeline_mode = #tpu.pipeline_mode<synchronous>, transform_indices = @transform_9, window_bounds = array<i64: 3, 1>}, {transform_indices = @transform_10, window_bounds = array<i64: 1, 3, 256>}]} {
    %c0 = arith.constant 0 : index
    %c0_0 = arith.constant 0 : index
    %c0_1 = arith.constant 0 : index
    %0 = vector.load %arg1[%c0, %c0_0, %c0_1] : memref<1x16x256xf32, #tpu.memory_space<vmem>>, vector<1x16x256xf32>
    %1 = vector.shape_cast %0 : vector<1x16x256xf32> to vector<16x256xf32>
    %c17_i32 = arith.constant 17 : i32
    %2 = tpu.dynamic_rotate %1 by %c17_i32 dim 1 : vector<16x256xf32>, i32 -> vector<16x256xf32>
    %c0_2 = arith.constant 0 : index
    %c0_3 = arith.constant 0 : index
    %c0_4 = arith.constant 0 : index
    %3 = vector.load %arg2[%c0_2, %c0_3, %c0_4] : memref<9x1x256xf32, #tpu.memory_space<vmem>>, vector<1x1x256xf32>
    %4 = vector.shape_cast %3 : vector<1x1x256xf32> to vector<1x256xf32>
    %5 = vector.broadcast %4 : vector<1x256xf32> to vector<16x256xf32>
    %6 = arith.mulf %2, %5 : vector<16x256xf32>
    %c16_i32 = arith.constant 16 : i32
    %7 = tpu.dynamic_rotate %1 by %c16_i32 dim 1 : vector<16x256xf32>, i32 -> vector<16x256xf32>
    %c1 = arith.constant 1 : index
    %c0_5 = arith.constant 0 : index
    %c0_6 = arith.constant 0 : index
    %8 = vector.load %arg2[%c1, %c0_5, %c0_6] : memref<9x1x256xf32, #tpu.memory_space<vmem>>, vector<1x1x256xf32>
    %9 = vector.shape_cast %8 : vector<1x1x256xf32> to vector<1x256xf32>
    %10 = vector.broadcast %9 : vector<1x256xf32> to vector<16x256xf32>
    %11 = arith.mulf %7, %10 : vector<16x256xf32>
    %c15_i32 = arith.constant 15 : i32
    %12 = tpu.dynamic_rotate %1 by %c15_i32 dim 1 : vector<16x256xf32>, i32 -> vector<16x256xf32>
    %c2 = arith.constant 2 : index
    %c0_7 = arith.constant 0 : index
    %c0_8 = arith.constant 0 : index
    %13 = vector.load %arg2[%c2, %c0_7, %c0_8] : memref<9x1x256xf32, #tpu.memory_space<vmem>>, vector<1x1x256xf32>
    %14 = vector.shape_cast %13 : vector<1x1x256xf32> to vector<1x256xf32>
    %15 = vector.broadcast %14 : vector<1x256xf32> to vector<16x256xf32>
    %16 = arith.mulf %12, %15 : vector<16x256xf32>
    %c1_i32 = arith.constant 1 : i32
    %17 = tpu.dynamic_rotate %1 by %c1_i32 dim 1 : vector<16x256xf32>, i32 -> vector<16x256xf32>
    %c3 = arith.constant 3 : index
    %c0_9 = arith.constant 0 : index
    %c0_10 = arith.constant 0 : index
    %18 = vector.load %arg2[%c3, %c0_9, %c0_10] : memref<9x1x256xf32, #tpu.memory_space<vmem>>, vector<1x1x256xf32>
    %19 = vector.shape_cast %18 : vector<1x1x256xf32> to vector<1x256xf32>
    %20 = vector.broadcast %19 : vector<1x256xf32> to vector<16x256xf32>
    %21 = arith.mulf %17, %20 : vector<16x256xf32>
    %c255_i32 = arith.constant 255 : i32
    %22 = tpu.dynamic_rotate %1 by %c255_i32 dim 1 : vector<16x256xf32>, i32 -> vector<16x256xf32>
    %c5 = arith.constant 5 : index
    %c0_11 = arith.constant 0 : index
    %c0_12 = arith.constant 0 : index
    %23 = vector.load %arg2[%c5, %c0_11, %c0_12] : memref<9x1x256xf32, #tpu.memory_space<vmem>>, vector<1x1x256xf32>
    %24 = vector.shape_cast %23 : vector<1x1x256xf32> to vector<1x256xf32>
    %25 = vector.broadcast %24 : vector<1x256xf32> to vector<16x256xf32>
    %26 = arith.mulf %22, %25 : vector<16x256xf32>
    %c241_i32 = arith.constant 241 : i32
    %27 = tpu.dynamic_rotate %1 by %c241_i32 dim 1 : vector<16x256xf32>, i32 -> vector<16x256xf32>
    %c6 = arith.constant 6 : index
    %c0_13 = arith.constant 0 : index
    %c0_14 = arith.constant 0 : index
    %28 = vector.load %arg2[%c6, %c0_13, %c0_14] : memref<9x1x256xf32, #tpu.memory_space<vmem>>, vector<1x1x256xf32>
    %29 = vector.shape_cast %28 : vector<1x1x256xf32> to vector<1x256xf32>
    %30 = vector.broadcast %29 : vector<1x256xf32> to vector<16x256xf32>
    %31 = arith.mulf %27, %30 : vector<16x256xf32>
    %c240_i32 = arith.constant 240 : i32
    %32 = tpu.dynamic_rotate %1 by %c240_i32 dim 1 : vector<16x256xf32>, i32 -> vector<16x256xf32>
    %c7 = arith.constant 7 : index
    %c0_15 = arith.constant 0 : index
    %c0_16 = arith.constant 0 : index
    %33 = vector.load %arg2[%c7, %c0_15, %c0_16] : memref<9x1x256xf32, #tpu.memory_space<vmem>>, vector<1x1x256xf32>
    %34 = vector.shape_cast %33 : vector<1x1x256xf32> to vector<1x256xf32>
    %35 = vector.broadcast %34 : vector<1x256xf32> to vector<16x256xf32>
    %36 = arith.mulf %32, %35 : vector<16x256xf32>
    %c239_i32 = arith.constant 239 : i32
    %37 = tpu.dynamic_rotate %1 by %c239_i32 dim 1 : vector<16x256xf32>, i32 -> vector<16x256xf32>
    %c8 = arith.constant 8 : index
    %c0_17 = arith.constant 0 : index
    %c0_18 = arith.constant 0 : index
    %38 = vector.load %arg2[%c8, %c0_17, %c0_18] : memref<9x1x256xf32, #tpu.memory_space<vmem>>, vector<1x1x256xf32>
    %39 = vector.shape_cast %38 : vector<1x1x256xf32> to vector<1x256xf32>
    %40 = vector.broadcast %39 : vector<1x256xf32> to vector<16x256xf32>
    %41 = arith.mulf %37, %40 : vector<16x256xf32>
    %42 = tpu.concatenate %6, %11, %16, %21, %1, %26, %31, %36, %41 in 0 : vector<16x256xf32>, vector<16x256xf32>, vector<16x256xf32>, vector<16x256xf32>, vector<16x256xf32>, vector<16x256xf32>, vector<16x256xf32>, vector<16x256xf32>, vector<16x256xf32> -> vector<144x256xf32>
    %c0_19 = arith.constant 0 : index
    %c0_20 = arith.constant 0 : index
    %43 = vector.load %arg3[%c0_19, %c0_20] : memref<16x144xf32, #tpu.memory_space<vmem>>, vector<16x144xf32>
    %cst = arith.constant dense<0.000000e+00> : vector<16x256xf32>
    %44 = tpu.matmul %43, %42, %cst {dimension_numbers = #tpu.dot_dimension_numbers<[1], [0], [0], [1], [0, 0, 1, 1], [], []>} : vector<16x144xf32>, vector<144x256xf32>, vector<16x256xf32> -> vector<16x256xf32>
    %c0_21 = arith.constant 0 : index
    %c0_22 = arith.constant 0 : index
    %45 = vector.load %arg4[%c0_21, %c0_22] : memref<16x1xf32, #tpu.memory_space<vmem>>, vector<16x1xf32>
    %46 = vector.broadcast %45 : vector<16x1xf32> to vector<16x256xf32>
    %47 = arith.addf %44, %46 : vector<16x256xf32>
    %c17_i32_23 = arith.constant 17 : i32
    %48 = tpu.dynamic_rotate %47 by %c17_i32_23 dim 1 : vector<16x256xf32>, i32 -> vector<16x256xf32>
    %c0_24 = arith.constant 0 : index
    %c0_25 = arith.constant 0 : index
    %c0_26 = arith.constant 0 : index
    %49 = vector.load %arg2[%c0_24, %c0_25, %c0_26] : memref<9x1x256xf32, #tpu.memory_space<vmem>>, vector<1x1x256xf32>
    %50 = vector.shape_cast %49 : vector<1x1x256xf32> to vector<1x256xf32>
    %51 = vector.broadcast %50 : vector<1x256xf32> to vector<16x256xf32>
    %52 = arith.mulf %48, %51 : vector<16x256xf32>
    %c16_i32_27 = arith.constant 16 : i32
    %53 = tpu.dynamic_rotate %47 by %c16_i32_27 dim 1 : vector<16x256xf32>, i32 -> vector<16x256xf32>
    %c1_28 = arith.constant 1 : index
    %c0_29 = arith.constant 0 : index
    %c0_30 = arith.constant 0 : index
    %54 = vector.load %arg2[%c1_28, %c0_29, %c0_30] : memref<9x1x256xf32, #tpu.memory_space<vmem>>, vector<1x1x256xf32>
    %55 = vector.shape_cast %54 : vector<1x1x256xf32> to vector<1x256xf32>
    %56 = vector.broadcast %55 : vector<1x256xf32> to vector<16x256xf32>
    %57 = arith.mulf %53, %56 : vector<16x256xf32>
    %c15_i32_31 = arith.constant 15 : i32
    %58 = tpu.dynamic_rotate %47 by %c15_i32_31 dim 1 : vector<16x256xf32>, i32 -> vector<16x256xf32>
    %c2_32 = arith.constant 2 : index
    %c0_33 = arith.constant 0 : index
    %c0_34 = arith.constant 0 : index
    %59 = vector.load %arg2[%c2_32, %c0_33, %c0_34] : memref<9x1x256xf32, #tpu.memory_space<vmem>>, vector<1x1x256xf32>
    %60 = vector.shape_cast %59 : vector<1x1x256xf32> to vector<1x256xf32>
    %61 = vector.broadcast %60 : vector<1x256xf32> to vector<16x256xf32>
    %62 = arith.mulf %58, %61 : vector<16x256xf32>
    %c1_i32_35 = arith.constant 1 : i32
    %63 = tpu.dynamic_rotate %47 by %c1_i32_35 dim 1 : vector<16x256xf32>, i32 -> vector<16x256xf32>
    %c3_36 = arith.constant 3 : index
    %c0_37 = arith.constant 0 : index
    %c0_38 = arith.constant 0 : index
    %64 = vector.load %arg2[%c3_36, %c0_37, %c0_38] : memref<9x1x256xf32, #tpu.memory_space<vmem>>, vector<1x1x256xf32>
    %65 = vector.shape_cast %64 : vector<1x1x256xf32> to vector<1x256xf32>
    %66 = vector.broadcast %65 : vector<1x256xf32> to vector<16x256xf32>
    %67 = arith.mulf %63, %66 : vector<16x256xf32>
    %c255_i32_39 = arith.constant 255 : i32
    %68 = tpu.dynamic_rotate %47 by %c255_i32_39 dim 1 : vector<16x256xf32>, i32 -> vector<16x256xf32>
    %c5_40 = arith.constant 5 : index
    %c0_41 = arith.constant 0 : index
    %c0_42 = arith.constant 0 : index
    %69 = vector.load %arg2[%c5_40, %c0_41, %c0_42] : memref<9x1x256xf32, #tpu.memory_space<vmem>>, vector<1x1x256xf32>
    %70 = vector.shape_cast %69 : vector<1x1x256xf32> to vector<1x256xf32>
    %71 = vector.broadcast %70 : vector<1x256xf32> to vector<16x256xf32>
    %72 = arith.mulf %68, %71 : vector<16x256xf32>
    %c241_i32_43 = arith.constant 241 : i32
    %73 = tpu.dynamic_rotate %47 by %c241_i32_43 dim 1 : vector<16x256xf32>, i32 -> vector<16x256xf32>
    %c6_44 = arith.constant 6 : index
    %c0_45 = arith.constant 0 : index
    %c0_46 = arith.constant 0 : index
    %74 = vector.load %arg2[%c6_44, %c0_45, %c0_46] : memref<9x1x256xf32, #tpu.memory_space<vmem>>, vector<1x1x256xf32>
    %75 = vector.shape_cast %74 : vector<1x1x256xf32> to vector<1x256xf32>
    %76 = vector.broadcast %75 : vector<1x256xf32> to vector<16x256xf32>
    %77 = arith.mulf %73, %76 : vector<16x256xf32>
    %c240_i32_47 = arith.constant 240 : i32
    %78 = tpu.dynamic_rotate %47 by %c240_i32_47 dim 1 : vector<16x256xf32>, i32 -> vector<16x256xf32>
    %c7_48 = arith.constant 7 : index
    %c0_49 = arith.constant 0 : index
    %c0_50 = arith.constant 0 : index
    %79 = vector.load %arg2[%c7_48, %c0_49, %c0_50] : memref<9x1x256xf32, #tpu.memory_space<vmem>>, vector<1x1x256xf32>
    %80 = vector.shape_cast %79 : vector<1x1x256xf32> to vector<1x256xf32>
    %81 = vector.broadcast %80 : vector<1x256xf32> to vector<16x256xf32>
    %82 = arith.mulf %78, %81 : vector<16x256xf32>
    %c239_i32_51 = arith.constant 239 : i32
    %83 = tpu.dynamic_rotate %47 by %c239_i32_51 dim 1 : vector<16x256xf32>, i32 -> vector<16x256xf32>
    %c8_52 = arith.constant 8 : index
    %c0_53 = arith.constant 0 : index
    %c0_54 = arith.constant 0 : index
    %84 = vector.load %arg2[%c8_52, %c0_53, %c0_54] : memref<9x1x256xf32, #tpu.memory_space<vmem>>, vector<1x1x256xf32>
    %85 = vector.shape_cast %84 : vector<1x1x256xf32> to vector<1x256xf32>
    %86 = vector.broadcast %85 : vector<1x256xf32> to vector<16x256xf32>
    %87 = arith.mulf %83, %86 : vector<16x256xf32>
    %88 = tpu.concatenate %52, %57, %62, %67, %47, %72, %77, %82, %87 in 0 : vector<16x256xf32>, vector<16x256xf32>, vector<16x256xf32>, vector<16x256xf32>, vector<16x256xf32>, vector<16x256xf32>, vector<16x256xf32>, vector<16x256xf32>, vector<16x256xf32> -> vector<144x256xf32>
    %c0_55 = arith.constant 0 : index
    %c0_56 = arith.constant 0 : index
    %89 = vector.load %arg5[%c0_55, %c0_56] : memref<16x144xf32, #tpu.memory_space<vmem>>, vector<16x144xf32>
    %cst_57 = arith.constant dense<0.000000e+00> : vector<16x256xf32>
    %90 = tpu.matmul %89, %88, %cst_57 {dimension_numbers = #tpu.dot_dimension_numbers<[1], [0], [0], [1], [0, 0, 1, 1], [], []>} : vector<16x144xf32>, vector<144x256xf32>, vector<16x256xf32> -> vector<16x256xf32>
    %c0_58 = arith.constant 0 : index
    %c0_59 = arith.constant 0 : index
    %91 = vector.load %arg6[%c0_58, %c0_59] : memref<16x1xf32, #tpu.memory_space<vmem>>, vector<16x1xf32>
    %92 = vector.broadcast %91 : vector<16x1xf32> to vector<16x256xf32>
    %93 = arith.addf %90, %92 : vector<16x256xf32>
    %cst_60 = arith.constant 0.000000e+00 : f32
    %94 = vector.broadcast %cst_60 : f32 to vector<16x256xf32>
    %95 = arith.maximumf %93, %94 : vector<16x256xf32>
    %c17_i32_61 = arith.constant 17 : i32
    %96 = tpu.dynamic_rotate %95 by %c17_i32_61 dim 1 : vector<16x256xf32>, i32 -> vector<16x256xf32>
    %c0_62 = arith.constant 0 : index
    %c0_63 = arith.constant 0 : index
    %c0_64 = arith.constant 0 : index
    %97 = vector.load %arg2[%c0_62, %c0_63, %c0_64] : memref<9x1x256xf32, #tpu.memory_space<vmem>>, vector<1x1x256xf32>
    %98 = vector.shape_cast %97 : vector<1x1x256xf32> to vector<1x256xf32>
    %99 = vector.broadcast %98 : vector<1x256xf32> to vector<16x256xf32>
    %100 = arith.mulf %96, %99 : vector<16x256xf32>
    %c16_i32_65 = arith.constant 16 : i32
    %101 = tpu.dynamic_rotate %95 by %c16_i32_65 dim 1 : vector<16x256xf32>, i32 -> vector<16x256xf32>
    %c1_66 = arith.constant 1 : index
    %c0_67 = arith.constant 0 : index
    %c0_68 = arith.constant 0 : index
    %102 = vector.load %arg2[%c1_66, %c0_67, %c0_68] : memref<9x1x256xf32, #tpu.memory_space<vmem>>, vector<1x1x256xf32>
    %103 = vector.shape_cast %102 : vector<1x1x256xf32> to vector<1x256xf32>
    %104 = vector.broadcast %103 : vector<1x256xf32> to vector<16x256xf32>
    %105 = arith.mulf %101, %104 : vector<16x256xf32>
    %c15_i32_69 = arith.constant 15 : i32
    %106 = tpu.dynamic_rotate %95 by %c15_i32_69 dim 1 : vector<16x256xf32>, i32 -> vector<16x256xf32>
    %c2_70 = arith.constant 2 : index
    %c0_71 = arith.constant 0 : index
    %c0_72 = arith.constant 0 : index
    %107 = vector.load %arg2[%c2_70, %c0_71, %c0_72] : memref<9x1x256xf32, #tpu.memory_space<vmem>>, vector<1x1x256xf32>
    %108 = vector.shape_cast %107 : vector<1x1x256xf32> to vector<1x256xf32>
    %109 = vector.broadcast %108 : vector<1x256xf32> to vector<16x256xf32>
    %110 = arith.mulf %106, %109 : vector<16x256xf32>
    %c1_i32_73 = arith.constant 1 : i32
    %111 = tpu.dynamic_rotate %95 by %c1_i32_73 dim 1 : vector<16x256xf32>, i32 -> vector<16x256xf32>
    %c3_74 = arith.constant 3 : index
    %c0_75 = arith.constant 0 : index
    %c0_76 = arith.constant 0 : index
    %112 = vector.load %arg2[%c3_74, %c0_75, %c0_76] : memref<9x1x256xf32, #tpu.memory_space<vmem>>, vector<1x1x256xf32>
    %113 = vector.shape_cast %112 : vector<1x1x256xf32> to vector<1x256xf32>
    %114 = vector.broadcast %113 : vector<1x256xf32> to vector<16x256xf32>
    %115 = arith.mulf %111, %114 : vector<16x256xf32>
    %c255_i32_77 = arith.constant 255 : i32
    %116 = tpu.dynamic_rotate %95 by %c255_i32_77 dim 1 : vector<16x256xf32>, i32 -> vector<16x256xf32>
    %c5_78 = arith.constant 5 : index
    %c0_79 = arith.constant 0 : index
    %c0_80 = arith.constant 0 : index
    %117 = vector.load %arg2[%c5_78, %c0_79, %c0_80] : memref<9x1x256xf32, #tpu.memory_space<vmem>>, vector<1x1x256xf32>
    %118 = vector.shape_cast %117 : vector<1x1x256xf32> to vector<1x256xf32>
    %119 = vector.broadcast %118 : vector<1x256xf32> to vector<16x256xf32>
    %120 = arith.mulf %116, %119 : vector<16x256xf32>
    %c241_i32_81 = arith.constant 241 : i32
    %121 = tpu.dynamic_rotate %95 by %c241_i32_81 dim 1 : vector<16x256xf32>, i32 -> vector<16x256xf32>
    %c6_82 = arith.constant 6 : index
    %c0_83 = arith.constant 0 : index
    %c0_84 = arith.constant 0 : index
    %122 = vector.load %arg2[%c6_82, %c0_83, %c0_84] : memref<9x1x256xf32, #tpu.memory_space<vmem>>, vector<1x1x256xf32>
    %123 = vector.shape_cast %122 : vector<1x1x256xf32> to vector<1x256xf32>
    %124 = vector.broadcast %123 : vector<1x256xf32> to vector<16x256xf32>
    %125 = arith.mulf %121, %124 : vector<16x256xf32>
    %c240_i32_85 = arith.constant 240 : i32
    %126 = tpu.dynamic_rotate %95 by %c240_i32_85 dim 1 : vector<16x256xf32>, i32 -> vector<16x256xf32>
    %c7_86 = arith.constant 7 : index
    %c0_87 = arith.constant 0 : index
    %c0_88 = arith.constant 0 : index
    %127 = vector.load %arg2[%c7_86, %c0_87, %c0_88] : memref<9x1x256xf32, #tpu.memory_space<vmem>>, vector<1x1x256xf32>
    %128 = vector.shape_cast %127 : vector<1x1x256xf32> to vector<1x256xf32>
    %129 = vector.broadcast %128 : vector<1x256xf32> to vector<16x256xf32>
    %130 = arith.mulf %126, %129 : vector<16x256xf32>
    %c239_i32_89 = arith.constant 239 : i32
    %131 = tpu.dynamic_rotate %95 by %c239_i32_89 dim 1 : vector<16x256xf32>, i32 -> vector<16x256xf32>
    %c8_90 = arith.constant 8 : index
    %c0_91 = arith.constant 0 : index
    %c0_92 = arith.constant 0 : index
    %132 = vector.load %arg2[%c8_90, %c0_91, %c0_92] : memref<9x1x256xf32, #tpu.memory_space<vmem>>, vector<1x1x256xf32>
    %133 = vector.shape_cast %132 : vector<1x1x256xf32> to vector<1x256xf32>
    %134 = vector.broadcast %133 : vector<1x256xf32> to vector<16x256xf32>
    %135 = arith.mulf %131, %134 : vector<16x256xf32>
    %136 = tpu.concatenate %100, %105, %110, %115, %95, %120, %125, %130, %135 in 0 : vector<16x256xf32>, vector<16x256xf32>, vector<16x256xf32>, vector<16x256xf32>, vector<16x256xf32>, vector<16x256xf32>, vector<16x256xf32>, vector<16x256xf32>, vector<16x256xf32> -> vector<144x256xf32>
    %c0_93 = arith.constant 0 : index
    %c0_94 = arith.constant 0 : index
    %137 = vector.load %arg7[%c0_93, %c0_94] : memref<16x144xf32, #tpu.memory_space<vmem>>, vector<16x144xf32>
    %cst_95 = arith.constant dense<0.000000e+00> : vector<16x256xf32>
    %138 = tpu.matmul %137, %136, %cst_95 {dimension_numbers = #tpu.dot_dimension_numbers<[1], [0], [0], [1], [0, 0, 1, 1], [], []>} : vector<16x144xf32>, vector<144x256xf32>, vector<16x256xf32> -> vector<16x256xf32>
    %c0_96 = arith.constant 0 : index
    %c0_97 = arith.constant 0 : index
    %139 = vector.load %arg8[%c0_96, %c0_97] : memref<16x1xf32, #tpu.memory_space<vmem>>, vector<16x1xf32>
    %140 = vector.broadcast %139 : vector<16x1xf32> to vector<16x256xf32>
    %141 = arith.addf %138, %140 : vector<16x256xf32>
    %142 = arith.addf %141, %47 : vector<16x256xf32>
    %c17_i32_98 = arith.constant 17 : i32
    %143 = tpu.dynamic_rotate %142 by %c17_i32_98 dim 1 : vector<16x256xf32>, i32 -> vector<16x256xf32>
    %c0_99 = arith.constant 0 : index
    %c0_100 = arith.constant 0 : index
    %c0_101 = arith.constant 0 : index
    %144 = vector.load %arg2[%c0_99, %c0_100, %c0_101] : memref<9x1x256xf32, #tpu.memory_space<vmem>>, vector<1x1x256xf32>
    %145 = vector.shape_cast %144 : vector<1x1x256xf32> to vector<1x256xf32>
    %146 = vector.broadcast %145 : vector<1x256xf32> to vector<16x256xf32>
    %147 = arith.mulf %143, %146 : vector<16x256xf32>
    %c16_i32_102 = arith.constant 16 : i32
    %148 = tpu.dynamic_rotate %142 by %c16_i32_102 dim 1 : vector<16x256xf32>, i32 -> vector<16x256xf32>
    %c1_103 = arith.constant 1 : index
    %c0_104 = arith.constant 0 : index
    %c0_105 = arith.constant 0 : index
    %149 = vector.load %arg2[%c1_103, %c0_104, %c0_105] : memref<9x1x256xf32, #tpu.memory_space<vmem>>, vector<1x1x256xf32>
    %150 = vector.shape_cast %149 : vector<1x1x256xf32> to vector<1x256xf32>
    %151 = vector.broadcast %150 : vector<1x256xf32> to vector<16x256xf32>
    %152 = arith.mulf %148, %151 : vector<16x256xf32>
    %c15_i32_106 = arith.constant 15 : i32
    %153 = tpu.dynamic_rotate %142 by %c15_i32_106 dim 1 : vector<16x256xf32>, i32 -> vector<16x256xf32>
    %c2_107 = arith.constant 2 : index
    %c0_108 = arith.constant 0 : index
    %c0_109 = arith.constant 0 : index
    %154 = vector.load %arg2[%c2_107, %c0_108, %c0_109] : memref<9x1x256xf32, #tpu.memory_space<vmem>>, vector<1x1x256xf32>
    %155 = vector.shape_cast %154 : vector<1x1x256xf32> to vector<1x256xf32>
    %156 = vector.broadcast %155 : vector<1x256xf32> to vector<16x256xf32>
    %157 = arith.mulf %153, %156 : vector<16x256xf32>
    %c1_i32_110 = arith.constant 1 : i32
    %158 = tpu.dynamic_rotate %142 by %c1_i32_110 dim 1 : vector<16x256xf32>, i32 -> vector<16x256xf32>
    %c3_111 = arith.constant 3 : index
    %c0_112 = arith.constant 0 : index
    %c0_113 = arith.constant 0 : index
    %159 = vector.load %arg2[%c3_111, %c0_112, %c0_113] : memref<9x1x256xf32, #tpu.memory_space<vmem>>, vector<1x1x256xf32>
    %160 = vector.shape_cast %159 : vector<1x1x256xf32> to vector<1x256xf32>
    %161 = vector.broadcast %160 : vector<1x256xf32> to vector<16x256xf32>
    %162 = arith.mulf %158, %161 : vector<16x256xf32>
    %c255_i32_114 = arith.constant 255 : i32
    %163 = tpu.dynamic_rotate %142 by %c255_i32_114 dim 1 : vector<16x256xf32>, i32 -> vector<16x256xf32>
    %c5_115 = arith.constant 5 : index
    %c0_116 = arith.constant 0 : index
    %c0_117 = arith.constant 0 : index
    %164 = vector.load %arg2[%c5_115, %c0_116, %c0_117] : memref<9x1x256xf32, #tpu.memory_space<vmem>>, vector<1x1x256xf32>
    %165 = vector.shape_cast %164 : vector<1x1x256xf32> to vector<1x256xf32>
    %166 = vector.broadcast %165 : vector<1x256xf32> to vector<16x256xf32>
    %167 = arith.mulf %163, %166 : vector<16x256xf32>
    %c241_i32_118 = arith.constant 241 : i32
    %168 = tpu.dynamic_rotate %142 by %c241_i32_118 dim 1 : vector<16x256xf32>, i32 -> vector<16x256xf32>
    %c6_119 = arith.constant 6 : index
    %c0_120 = arith.constant 0 : index
    %c0_121 = arith.constant 0 : index
    %169 = vector.load %arg2[%c6_119, %c0_120, %c0_121] : memref<9x1x256xf32, #tpu.memory_space<vmem>>, vector<1x1x256xf32>
    %170 = vector.shape_cast %169 : vector<1x1x256xf32> to vector<1x256xf32>
    %171 = vector.broadcast %170 : vector<1x256xf32> to vector<16x256xf32>
    %172 = arith.mulf %168, %171 : vector<16x256xf32>
    %c240_i32_122 = arith.constant 240 : i32
    %173 = tpu.dynamic_rotate %142 by %c240_i32_122 dim 1 : vector<16x256xf32>, i32 -> vector<16x256xf32>
    %c7_123 = arith.constant 7 : index
    %c0_124 = arith.constant 0 : index
    %c0_125 = arith.constant 0 : index
    %174 = vector.load %arg2[%c7_123, %c0_124, %c0_125] : memref<9x1x256xf32, #tpu.memory_space<vmem>>, vector<1x1x256xf32>
    %175 = vector.shape_cast %174 : vector<1x1x256xf32> to vector<1x256xf32>
    %176 = vector.broadcast %175 : vector<1x256xf32> to vector<16x256xf32>
    %177 = arith.mulf %173, %176 : vector<16x256xf32>
    %c239_i32_126 = arith.constant 239 : i32
    %178 = tpu.dynamic_rotate %142 by %c239_i32_126 dim 1 : vector<16x256xf32>, i32 -> vector<16x256xf32>
    %c8_127 = arith.constant 8 : index
    %c0_128 = arith.constant 0 : index
    %c0_129 = arith.constant 0 : index
    %179 = vector.load %arg2[%c8_127, %c0_128, %c0_129] : memref<9x1x256xf32, #tpu.memory_space<vmem>>, vector<1x1x256xf32>
    %180 = vector.shape_cast %179 : vector<1x1x256xf32> to vector<1x256xf32>
    %181 = vector.broadcast %180 : vector<1x256xf32> to vector<16x256xf32>
    %182 = arith.mulf %178, %181 : vector<16x256xf32>
    %183 = tpu.concatenate %147, %152, %157, %162, %142, %167, %172, %177, %182 in 0 : vector<16x256xf32>, vector<16x256xf32>, vector<16x256xf32>, vector<16x256xf32>, vector<16x256xf32>, vector<16x256xf32>, vector<16x256xf32>, vector<16x256xf32>, vector<16x256xf32> -> vector<144x256xf32>
    %c0_130 = arith.constant 0 : index
    %c0_131 = arith.constant 0 : index
    %184 = vector.load %arg9[%c0_130, %c0_131] : memref<3x144xf32, #tpu.memory_space<vmem>>, vector<3x144xf32>
    %cst_132 = arith.constant dense<0.000000e+00> : vector<3x256xf32>
    %185 = tpu.matmul %184, %183, %cst_132 {dimension_numbers = #tpu.dot_dimension_numbers<[1], [0], [0], [1], [0, 0, 1, 1], [], []>} : vector<3x144xf32>, vector<144x256xf32>, vector<3x256xf32> -> vector<3x256xf32>
    %c0_133 = arith.constant 0 : index
    %c0_134 = arith.constant 0 : index
    %186 = vector.load %arg10[%c0_133, %c0_134] : memref<3x1xf32, #tpu.memory_space<vmem>>, vector<3x1xf32>
    %187 = vector.broadcast %186 : vector<3x1xf32> to vector<3x256xf32>
    %188 = arith.addf %185, %187 : vector<3x256xf32>
    %c0_135 = arith.constant 0 : index
    %c0_136 = arith.constant 0 : index
    %c0_137 = arith.constant 0 : index
    %189 = vector.load %arg11[%c0_135, %c0_136, %c0_137] : memref<1x3x256xf32, #tpu.memory_space<vmem>>, vector<1x3x256xf32>
    %190 = vector.shape_cast %189 : vector<1x3x256xf32> to vector<3x256xf32>
    %191 = vector.shape_cast %188 : vector<3x256xf32> to vector<1x3x256xf32>
    tpu.vector_store %arg11[%c0_135, %c0_136, %c0_137], %191 {strides = array<i32>} : memref<1x3x256xf32, #tpu.memory_space<vmem>>, vector<1x3x256xf32>,
    return
  }
  func.func @transform_0(%arg0: i32) -> (i32, i32, i32) {
    %c0_i32 = arith.constant 0 : i32
    %c0_i32_0 = arith.constant 0 : i32
    %c0_i32_1 = arith.constant 0 : i32
    return %arg0, %c0_i32, %c0_i32_0 : i32, i32, i32
  }
  func.func @transform_1(%arg0: i32) -> (i32, i32, i32) {
    %c0_i32 = arith.constant 0 : i32
    %c0_i32_0 = arith.constant 0 : i32
    %c0_i32_1 = arith.constant 0 : i32
    %c0_i32_2 = arith.constant 0 : i32
    return %c0_i32, %c0_i32_0, %c0_i32_1 : i32, i32, i32
  }
  func.func @transform_2(%arg0: i32) -> (i32, i32) {
    %c0_i32 = arith.constant 0 : i32
    %c0_i32_0 = arith.constant 0 : i32
    %c0_i32_1 = arith.constant 0 : i32
    return %c0_i32, %c0_i32_0 : i32, i32
  }
  func.func @transform_3(%arg0: i32) -> (i32, i32) {
    %c0_i32 = arith.constant 0 : i32
    %c0_i32_0 = arith.constant 0 : i32
    %c0_i32_1 = arith.constant 0 : i32
    return %c0_i32, %c0_i32_0 : i32, i32
  }
  func.func @transform_4(%arg0: i32) -> (i32, i32) {
    %c0_i32 = arith.constant 0 : i32
    %c0_i32_0 = arith.constant 0 : i32
    %c0_i32_1 = arith.constant 0 : i32
    return %c0_i32, %c0_i32_0 : i32, i32
  }
  func.func @transform_5(%arg0: i32) -> (i32, i32) {
    %c0_i32 = arith.constant 0 : i32
    %c0_i32_0 = arith.constant 0 : i32
    %c0_i32_1 = arith.constant 0 : i32
    return %c0_i32, %c0_i32_0 : i32, i32
  }
  func.func @transform_6(%arg0: i32) -> (i32, i32) {
    %c0_i32 = arith.constant 0 : i32
    %c0_i32_0 = arith.constant 0 : i32
    %c0_i32_1 = arith.constant 0 : i32
    return %c0_i32, %c0_i32_0 : i32, i32
  }
  func.func @transform_7(%arg0: i32) -> (i32, i32) {
    %c0_i32 = arith.constant 0 : i32
    %c0_i32_0 = arith.constant 0 : i32
    %c0_i32_1 = arith.constant 0 : i32
    return %c0_i32, %c0_i32_0 : i32, i32
  }
  func.func @transform_8(%arg0: i32) -> (i32, i32) {
    %c0_i32 = arith.constant 0 : i32
    %c0_i32_0 = arith.constant 0 : i32
    %c0_i32_1 = arith.constant 0 : i32
    return %c0_i32, %c0_i32_0 : i32, i32
  }
  func.func @transform_9(%arg0: i32) -> (i32, i32) {
    %c0_i32 = arith.constant 0 : i32
    %c0_i32_0 = arith.constant 0 : i32
    %c0_i32_1 = arith.constant 0 : i32
    return %c0_i32, %c0_i32_0 : i32, i32
  }
  func.func @transform_10(%arg0: i32) -> (i32, i32, i32) {
    %c0_i32 = arith.constant 0 : i32
    %c0_i32_0 = arith.constant 0 : i32
    %c0_i32_1 = arith.constant 0 : i32
    return %arg0, %c0_i32, %c0_i32_0 : i32, i32, i32
  }
}

</mosaic_0001>

<llo_original>
// kernel: reconstruct_forward.1
$region0: #{reconstruct_forward.1}
  #allocation0 [shape = 'u32[]', space=smem, size = 0x4, offset = 0x4, fixed_abs, tag = 'smem constant byte address 0x4 - core index']
  #allocation1 [shape = 'u32[144,128]{1,0:T(1,128)}', space=vmem, size = 0x12000, scoped, tag = 'internal scratch']
  %s0 = inlined_call_operand.vmem [shape: f32[2,16,256], index: 0, kind: input, shape index: {}]
  %s1 = inlined_call_operand.vmem [shape: f32[9,1,256], index: 1, kind: input, shape index: {}]
  %s2 = inlined_call_operand.vmem [shape: f32[16,144], index: 2, kind: input, shape index: {}]
  %s3 = inlined_call_operand.vmem [shape: f32[16,1], index: 3, kind: input, shape index: {}]
  %s4 = inlined_call_operand.vmem [shape: f32[16,144], index: 4, kind: input, shape index: {}]
  %s5 = inlined_call_operand.vmem [shape: f32[16,1], index: 5, kind: input, shape index: {}]
  %s6 = inlined_call_operand.vmem [shape: f32[16,144], index: 6, kind: input, shape index: {}]
  %s7 = inlined_call_operand.vmem [shape: f32[16,1], index: 7, kind: input, shape index: {}]
  %s8 = inlined_call_operand.vmem [shape: f32[3,144], index: 8, kind: input, shape index: {}]
  %s9 = inlined_call_operand.vmem [shape: f32[3,1], index: 9, kind: input, shape index: {}]
  %s10 = inlined_call_operand.vmem [shape: f32[2,3,256], index: 10, kind: output, shape index: {}]
  %s11 = sld [smem:[#allocation0]]
  $region73: #{reconstruct_forward.1} parent=0
    _
  %s13 = ssub.s32 1, %s11
  %s14 = scalar_select 0, %s13, %s11
  loop: start=0, step=1, limit=4
  $region2: #{reconstruct_forward.1} parent=0 // loop_pre_header
    _
  $region3: #{reconstruct_forward.1} parent=0 // loop_header
    %s16 = sphi 0, %s20
    %p17 = scmp.ge.s32.totalorder %s16, 4
    %s26 = sphi 0, %s28
    %s29 = sphi 0, %s26
    %s30 = sphi 0, %s29
    %s46 = sphi 0, %s30
    %s50 = sphi 0, %s50
    %s52 = sphi 0, %s50
    %s53 = sphi 0, %s52
    %s67 = sphi 0, %s53
    %s71 = sphi 0, %s71
    %s73 = sphi 0, %s71
    %s74 = sphi 0, %s73
    %s88 = sphi 0, %s74
    %s92 = sphi 0, %s92
    %s94 = sphi 0, %s92
    %s95 = sphi 0, %s94
    %s109 = sphi 0, %s95
    %s113 = sphi 0, %s113
    %s115 = sphi 0, %s113
    %s116 = sphi 0, %s115
    %s130 = sphi 0, %s116
    %s134 = sphi 0, %s134
    %s136 = sphi 0, %s134
    %s137 = sphi 0, %s136
    %s151 = sphi 0, %s137
    %s155 = sphi 0, %s155
    %s157 = sphi 0, %s155
    %s158 = sphi 0, %s157
    %s172 = sphi 0, %s158
    %s176 = sphi 0, %s176
    %s178 = sphi 0, %s176
    %s179 = sphi 0, %s178
    %s193 = sphi 0, %s179
    %s197 = sphi 0, %s197
    %s199 = sphi 0, %s197
    %s200 = sphi 0, %s199
    %s214 = sphi 0, %s200
    %s218 = sphi 0, %s218
    %s220 = sphi 0, %s218
    %s221 = sphi 0, %s220
    %s235 = sphi 0, %s221
    %s241 = sphi 0, %s243
    %s244 = sphi 0, %s241
    %s245 = sphi 0, %s244
    %s261 = sphi 0, %s245
  $region4: #{reconstruct_forward.1} parent=0 // loop_header_branch
    %19 = sbr.rel (%p17) target = $region8
  $region5: #{reconstruct_forward.1} parent=0 // loop_body
    %s21 = ssub.s32 %s16, 1
    %s22 = ssub.s32 %s16, 2
    %s23 = sadd.s32 %s16, 1
    %s24 = ssub.s32 %s16, %s23
    %p25 = scmp.eq.s32.totalorder %s24, 0
    %s27 = sadd.s32 %s26, 1
    %s28 = scalar_select %p25, %s26, %s27
    %p31 = pneg %p25
    %p32 = scmp.eq.s32.totalorder %s16, 1
    %p33 = por %p31, %p32
    %p34 = scmp.ne.s32.totalorder %s26, %s29
    %p35 = scmp.eq.s32.totalorder %s16, 0
    %p36 = por %p34, %p35
    %p37 = scmp.ne.s32.totalorder %s26, %s29
    %p38 = scmp.eq.s32.totalorder %s21, 1
    %p39 = por %p37, %p38
    %p40 = scmp.ne.s32.totalorder %s29, %s30
    %p41 = scmp.eq.s32.totalorder %s21, 0
    %p42 = por %p40, %p41
    %p43 = scmp.ne.s32.totalorder %s29, %s30
    %p44 = scmp.eq.s32.totalorder %s22, 1
    %p45 = por %p43, %p44
    %p47 = scmp.ne.s32.totalorder %s30, %s46
    %p48 = scmp.eq.s32.totalorder %s22, 0
    %p49 = por %p47, %p48
    %s51 = sadd.s32 %s50, 1
    %p54 = scmp.eq.s32.totalorder %s16, 1
    %p55 = scmp.ne.s32.totalorder %s50, %s52
    %p56 = scmp.eq.s32.totalorder %s16, 0
    %p57 = por %p55, %p56
    %p58 = scmp.ne.s32.totalorder %s50, %s52
    %p59 = scmp.eq.s32.totalorder %s21, 1
    %p60 = por %p58, %p59
    %p61 = scmp.ne.s32.totalorder %s52, %s53
    %p62 = scmp.eq.s32.totalorder %s21, 0
    %p63 = por %p61, %p62
    %p64 = scmp.ne.s32.totalorder %s52, %s53
    %p65 = scmp.eq.s32.totalorder %s22, 1
    %p66 = por %p64, %p65
    %p68 = scmp.ne.s32.totalorder %s53, %s67
    %p69 = scmp.eq.s32.totalorder %s22, 0
    %p70 = por %p68, %p69
    %s72 = sadd.s32 %s71, 1
    %p75 = scmp.eq.s32.totalorder %s16, 1
    %p76 = scmp.ne.s32.totalorder %s71, %s73
    %p77 = scmp.eq.s32.totalorder %s16, 0
    %p78 = por %p76, %p77
    %p79 = scmp.ne.s32.totalorder %s71, %s73
    %p80 = scmp.eq.s32.totalorder %s21, 1
    %p81 = por %p79, %p80
    %p82 = scmp.ne.s32.totalorder %s73, %s74
    %p83 = scmp.eq.s32.totalorder %s21, 0
    %p84 = por %p82, %p83
    %p85 = scmp.ne.s32.totalorder %s73, %s74
    %p86 = scmp.eq.s32.totalorder %s22, 1
    %p87 = por %p85, %p86
    %p89 = scmp.ne.s32.totalorder %s74, %s88
    %p90 = scmp.eq.s32.totalorder %s22, 0
    %p91 = por %p89, %p90
    %s93 = sadd.s32 %s92, 1
    %p96 = scmp.eq.s32.totalorder %s16, 1
    %p97 = scmp.ne.s32.totalorder %s92, %s94
    %p98 = scmp.eq.s32.totalorder %s16, 0
    %p99 = por %p97, %p98
    %p100 = scmp.ne.s32.totalorder %s92, %s94
    %p101 = scmp.eq.s32.totalorder %s21, 1
    %p102 = por %p100, %p101
    %p103 = scmp.ne.s32.totalorder %s94, %s95
    %p104 = scmp.eq.s32.totalorder %s21, 0
    %p105 = por %p103, %p104
    %p106 = scmp.ne.s32.totalorder %s94, %s95
    %p107 = scmp.eq.s32.totalorder %s22, 1
    %p108 = por %p106, %p107
    %p110 = scmp.ne.s32.totalorder %s95, %s109
    %p111 = scmp.eq.s32.totalorder %s22, 0
    %p112 = por %p110, %p111
    %s114 = sadd.s32 %s113, 1
    %p117 = scmp.eq.s32.totalorder %s16, 1
    %p118 = scmp.ne.s32.totalorder %s113, %s115
    %p119 = scmp.eq.s32.totalorder %s16, 0
    %p120 = por %p118, %p119
    %p121 = scmp.ne.s32.totalorder %s113, %s115
    %p122 = scmp.eq.s32.totalorder %s21, 1
    %p123 = por %p121, %p122
    %p124 = scmp.ne.s32.totalorder %s115, %s116
    %p125 = scmp.eq.s32.totalorder %s21, 0
    %p126 = por %p124, %p125
    %p127 = scmp.ne.s32.totalorder %s115, %s116
    %p128 = scmp.eq.s32.totalorder %s22, 1
    %p129 = por %p127, %p128
    %p131 = scmp.ne.s32.totalorder %s116, %s130
    %p132 = scmp.eq.s32.totalorder %s22, 0
    %p133 = por %p131, %p132
    %s135 = sadd.s32 %s134, 1
    %p138 = scmp.eq.s32.totalorder %s16, 1
    %p139 = scmp.ne.s32.totalorder %s134, %s136
    %p140 = scmp.eq.s32.totalorder %s16, 0
    %p141 = por %p139, %p140
    %p142 = scmp.ne.s32.totalorder %s134, %s136
    %p143 = scmp.eq.s32.totalorder %s21, 1
    %p144 = por %p142, %p143
    %p145 = scmp.ne.s32.totalorder %s136, %s137
    %p146 = scmp.eq.s32.totalorder %s21, 0
    %p147 = por %p145, %p146
    %p148 = scmp.ne.s32.totalorder %s136, %s137
    %p149 = scmp.eq.s32.totalorder %s22, 1
    %p150 = por %p148, %p149
    %p152 = scmp.ne.s32.totalorder %s137, %s151
    %p153 = scmp.eq.s32.totalorder %s22, 0
    %p154 = por %p152, %p153
    %s156 = sadd.s32 %s155, 1
    %p159 = scmp.eq.s32.totalorder %s16, 1
    %p160 = scmp.ne.s32.totalorder %s155, %s157
    %p161 = scmp.eq.s32.totalorder %s16, 0
    %p162 = por %p160, %p161
    %p163 = scmp.ne.s32.totalorder %s155, %s157
    %p164 = scmp.eq.s32.totalorder %s21, 1
    %p165 = por %p163, %p164
    %p166 = scmp.ne.s32.totalorder %s157, %s158
    %p167 = scmp.eq.s32.totalorder %s21, 0
    %p168 = por %p166, %p167
    %p169 = scmp.ne.s32.totalorder %s157, %s158
    %p170 = scmp.eq.s32.totalorder %s22, 1
    %p171 = por %p169, %p170
    %p173 = scmp.ne.s32.totalorder %s158, %s172
    %p174 = scmp.eq.s32.totalorder %s22, 0
    %p175 = por %p173, %p174
    %s177 = sadd.s32 %s176, 1
    %p180 = scmp.eq.s32.totalorder %s16, 1
    %p181 = scmp.ne.s32.totalorder %s176, %s178
    %p182 = scmp.eq.s32.totalorder %s16, 0
    %p183 = por %p181, %p182
    %p184 = scmp.ne.s32.totalorder %s176, %s178
    %p185 = scmp.eq.s32.totalorder %s21, 1
    %p186 = por %p184, %p185
    %p187 = scmp.ne.s32.totalorder %s178, %s179
    %p188 = scmp.eq.s32.totalorder %s21, 0
    %p189 = por %p187, %p188
    %p190 = scmp.ne.s32.totalorder %s178, %s179
    %p191 = scmp.eq.s32.totalorder %s22, 1
    %p192 = por %p190, %p191
    %p194 = scmp.ne.s32.totalorder %s179, %s193
    %p195 = scmp.eq.s32.totalorder %s22, 0
    %p196 = por %p194, %p195
    %s198 = sadd.s32 %s197, 1
    %p201 = scmp.eq.s32.totalorder %s16, 1
    %p202 = scmp.ne.s32.totalorder %s197, %s199
    %p203 = scmp.eq.s32.totalorder %s16, 0
    %p204 = por %p202, %p203
    %p205 = scmp.ne.s32.totalorder %s197, %s199
    %p206 = scmp.eq.s32.totalorder %s21, 1
    %p207 = por %p205, %p206
    %p208 = scmp.ne.s32.totalorder %s199, %s200
    %p209 = scmp.eq.s32.totalorder %s21, 0
    %p210 = por %p208, %p209
    %p211 = scmp.ne.s32.totalorder %s199, %s200
    %p212 = scmp.eq.s32.totalorder %s22, 1
    %p213 = por %p211, %p212
    %p215 = scmp.ne.s32.totalorder %s200, %s214
    %p216 = scmp.eq.s32.totalorder %s22, 0
    %p217 = por %p215, %p216
    %s219 = sadd.s32 %s218, 1
    %p222 = scmp.eq.s32.totalorder %s16, 1
    %p223 = scmp.ne.s32.totalorder %s218, %s220
    %p224 = scmp.eq.s32.totalorder %s16, 0
    %p225 = por %p223, %p224
    %p226 = scmp.ne.s32.totalorder %s218, %s220
    %p227 = scmp.eq.s32.totalorder %s21, 1
    %p228 = por %p226, %p227
    %p229 = scmp.ne.s32.totalorder %s220, %s221
    %p230 = scmp.eq.s32.totalorder %s21, 0
    %p231 = por %p229, %p230
    %p232 = scmp.ne.s32.totalorder %s220, %s221
    %p233 = scmp.eq.s32.totalorder %s22, 1
    %p234 = por %p232, %p233
    %p236 = scmp.ne.s32.totalorder %s221, %s235
    %p237 = scmp.eq.s32.totalorder %s22, 0
    %p238 = por %p236, %p237
    %s239 = ssub.s32 %s16, %s23
    %p240 = scmp.eq.s32.totalorder %s239, 0
    %s242 = sadd.s32 %s241, 1
    %s243 = scalar_select %p240, %s241, %s242
    %p246 = pneg %p240
    %p247 = scmp.eq.s32.totalorder %s16, 1
    %p248 = por %p246, %p247
    %p249 = scmp.ne.s32.totalorder %s241, %s244
    %p250 = scmp.eq.s32.totalorder %s16, 0
    %p251 = por %p249, %p250
    %p252 = scmp.ne.s32.totalorder %s241, %s244
    %p253 = scmp.eq.s32.totalorder %s21, 1
    %p254 = por %p252, %p253
    %p255 = scmp.ne.s32.totalorder %s244, %s245
    %p256 = scmp.eq.s32.totalorder %s21, 0
    %p257 = por %p255, %p256
    %p258 = scmp.ne.s32.totalorder %s244, %s245
    %p259 = scmp.eq.s32.totalorder %s22, 1
    %p260 = por %p258, %p259
    %p262 = scmp.ne.s32.totalorder %s245, %s261
    %p263 = scmp.eq.s32.totalorder %s22, 0
    %p264 = por %p262, %p263
    %p265 = scmp.le.s32.totalorder 1, %s16
    %p266 = scmp.lt.s32.totalorder %s16, 3
    %p267 = pnand %p265, %p266
    %p268 = pneg %p267
    // Predicated region
    $region9: #{reconstruct_forward.1} parent=5 // pred_check
      _
    $region10: #{reconstruct_forward.1} parent=5 // pred_check_branch
      %270 = sbr.rel (%p267) target = $region12
    $region11: #{reconstruct_forward.1} parent=5 // pred_region
      %s271 = ssub.s32 %s16, 1
      // Predicated region
      $region13: #{reconstruct_forward.1} parent=11 // pred_check
        %p272 = pneg %p63
      $region14: #{reconstruct_forward.1} parent=11 // pred_check_branch
        %274 = sbr.rel (%p272) target = $region16
      $region15: #{reconstruct_forward.1} parent=11 // pred_region
        _
      $region16: #{reconstruct_forward.1} parent=11 // pred_fallthru
        _
      // Predicated region
      $region17: #{reconstruct_forward.1} parent=11 // pred_check
        %p275 = pneg %p84
      $region18: #{reconstruct_forward.1} parent=11 // pred_check_branch
        %277 = sbr.rel (%p275) target = $region20
      $region19: #{reconstruct_forward.1} parent=11 // pred_region
        _
      $region20: #{reconstruct_forward.1} parent=11 // pred_fallthru
        _
      // Predicated region
      $region21: #{reconstruct_forward.1} parent=11 // pred_check
        %p278 = pneg %p105
      $region22: #{reconstruct_forward.1} parent=11 // pred_check_branch
        %280 = sbr.rel (%p278) target = $region24
      $region23: #{reconstruct_forward.1} parent=11 // pred_region
        _
      $region24: #{reconstruct_forward.1} parent=11 // pred_fallthru
        _
      // Predicated region
      $region25: #{reconstruct_forward.1} parent=11 // pred_check
        %p281 = pneg %p126
      $region26: #{reconstruct_forward.1} parent=11 // pred_check_branch
        %283 = sbr.rel (%p281) target = $region28
      $region27: #{reconstruct_forward.1} parent=11 // pred_region
        _
      $region28: #{reconstruct_forward.1} parent=11 // pred_fallthru
        _
      // Predicated region
      $region29: #{reconstruct_forward.1} parent=11 // pred_check
        %p284 = pneg %p147
      $region30: #{reconstruct_forward.1} parent=11 // pred_check_branch
        %286 = sbr.rel (%p284) target = $region32
      $region31: #{reconstruct_forward.1} parent=11 // pred_region
        _
      $region32: #{reconstruct_forward.1} parent=11 // pred_fallthru
        _
      // Predicated region
      $region33: #{reconstruct_forward.1} parent=11 // pred_check
        %p287 = pneg %p168
      $region34: #{reconstruct_forward.1} parent=11 // pred_check_branch
        %289 = sbr.rel (%p287) target = $region36
      $region35: #{reconstruct_forward.1} parent=11 // pred_region
        _
      $region36: #{reconstruct_forward.1} parent=11 // pred_fallthru
        _
      // Predicated region
      $region37: #{reconstruct_forward.1} parent=11 // pred_check
        %p290 = pneg %p189
      $region38: #{reconstruct_forward.1} parent=11 // pred_check_branch
        %292 = sbr.rel (%p290) target = $region40
      $region39: #{reconstruct_forward.1} parent=11 // pred_region
        _
      $region40: #{reconstruct_forward.1} parent=11 // pred_fallthru
        _
      // Predicated region
      $region41: #{reconstruct_forward.1} parent=11 // pred_check
        %p293 = pneg %p210
      $region42: #{reconstruct_forward.1} parent=11 // pred_check_branch
        %295 = sbr.rel (%p293) target = $region44
      $region43: #{reconstruct_forward.1} parent=11 // pred_region
        _
      $region44: #{reconstruct_forward.1} parent=11 // pred_fallthru
        _
      // Predicated region
      $region45: #{reconstruct_forward.1} parent=11 // pred_check
        %p296 = pneg %p231
      $region46: #{reconstruct_forward.1} parent=11 // pred_check_branch
        %298 = sbr.rel (%p296) target = $region48
      $region47: #{reconstruct_forward.1} parent=11 // pred_region
        _
      $region48: #{reconstruct_forward.1} parent=11 // pred_fallthru
        _
    $region12: #{reconstruct_forward.1} parent=5 // pred_fallthru
      _
    %p299 = scmp.lt.s32.totalorder %s16, 2
    // Predicated region
    $region49: #{reconstruct_forward.1} parent=5 // pred_check
      %p300 = pneg %p299
    $region50: #{reconstruct_forward.1} parent=5 // pred_check_branch
      %302 = sbr.rel (%p300) target = $region52
    $region51: #{reconstruct_forward.1} parent=5 // pred_region
      // Predicated region
      $region53: #{reconstruct_forward.1} parent=51 // pred_check
        %p303 = pneg %p36
      $region54: #{reconstruct_forward.1} parent=51 // pred_check_branch
        %305 = sbr.rel (%p303) target = $region56
      $region55: #{reconstruct_forward.1} parent=51 // pred_region
        %p306 = scmp.lt.s32.totalorder %s16, 1
        %s307 = scalar_select %p306, %s16, 1
        %s308 = smul.addr %s307, 4
        %s309 = smul.addr %s308, 8
        %s310 = scalar_lea.vmem %s0, %s309
      $region56: #{reconstruct_forward.1} parent=51 // pred_fallthru
        _
    $region52: #{reconstruct_forward.1} parent=5 // pred_fallthru
      _
    %p311 = scmp.le.s32.totalorder 1, %s16
    %p312 = scmp.lt.s32.totalorder %s16, 3
    %p313 = pnand %p311, %p312
    %p314 = pneg %p313
    // Predicated region
    $region57: #{reconstruct_forward.1} parent=5 // pred_check
      _
    $region58: #{reconstruct_forward.1} parent=5 // pred_check_branch
      %316 = sbr.rel (%p313) target = $region60
    $region59: #{reconstruct_forward.1} parent=5 // pred_region
      %s317 = ssub.s32 %s16, 1
      %p318 = scmp.lt.s32.totalorder %s21, 1
      %s319 = scalar_select %p318, %s21, 1
      %s320 = smul.addr %s319, 4
      %s321 = smul.addr %s320, 8
      %s322 = scalar_lea.vmem %s0, %s321
      %p323 = pneg %p42
      %p324 = pneg %p39
      %p325 = pneg %p63
      %p326 = pneg %p60
      %p327 = pneg %p84
      %p328 = pneg %p81
      %p329 = pneg %p105
      %p330 = pneg %p102
      %p331 = pneg %p126
      %p332 = pneg %p123
      %p333 = pneg %p147
      %p334 = pneg %p144
      %p335 = pneg %p168
      %p336 = pneg %p165
      %p337 = pneg %p189
      %p338 = pneg %p186
      %p339 = pneg %p210
      %p340 = pneg %p207
      %p341 = pneg %p231
      %p342 = pneg %p228
      %p343 = pneg %p257
      %p344 = pneg %p254
      %p345 = scmp.lt.s32.totalorder %s21, 1
      %s346 = scalar_select %p345, %s21, 1
      %s347 = smul.addr %s346, 2
      %s348 = smul.addr %s347, 4
      %s349 = scalar_lea.vmem %s10, %s348
      %p350 = scmp.lt.s32.totalorder %s21, 1
      %s351 = scalar_select %p350, %s21, 1
      %s352 = smul.addr %s351, 4
      %s353 = smul.addr %s352, 8
      %s354 = scalar_lea.vmem %s0, %s353
      %p355 = scmp.lt.s32.totalorder %s21, 1
      %s356 = scalar_select %p355, %s21, 1
      %s357 = smul.addr %s356, 2
      %s358 = smul.addr %s357, 4
      %s359 = scalar_lea.vmem %s10, %s358
      %v360 = vld [vmem:[%s354] sm:$0xff]
      %v361 = vld [vmem:[%s354 + $0x8] sm:$0xff]
      %v362 = vld [vmem:[%s354 + $0x10] sm:$0xff]
      %v363 = vld [vmem:[%s354 + $0x18] sm:$0xff]
      %364 = vrot.lane.b32.xlu0 %v360, 17
      %v365 = vpop.permute.xlu0 %364
      %366 = vrot.lane.b32.xlu0 %v362, 17
      %v367 = vpop.permute.xlu0 %366
      %368 = vrot.lane.b32.xlu0 %v361, 17
      %v369 = vpop.permute.xlu0 %368
      %370 = vrot.lane.b32.xlu0 %v363, 17
      %v371 = vpop.permute.xlu0 %370
      %v372 = vlaneseq
      %v373 = vand.u32 %v372, 127
      %vm374 = vcmp.lt.s32.totalorder %v373, 17
      %v375 = vsel %vm374, %v365, %v369
      %v376 = vsel %vm374, %v367, %v371
      %v377 = vsel %vm374, %v369, %v365
      %v378 = vsel %vm374, %v371, %v367
      %v379 = vld [vmem:[%s1] sm:$0x3]
      %v381 = vlaneseq
      %v382 = vshrl.u32 %v381, 7
      %v383 = vsub.s32 0, %v382
      %v384 = vrot.slane %v379, %v383
      %v385 = vlaneseq
      %v386 = vshrl.u32 %v385, 7
      %v387 = vsub.s32 1, %v386
      %v388 = vrot.slane %v379, %v387
      %v391 = vmul.f32 %v377, %v384
      %v392 = vmul.f32 %v375, %v388
      %v393 = vmul.f32 %v378, %v384
      %v394 = vmul.f32 %v376, %v388
      %395 = vrot.lane.b32.xlu0 %v360, 16
      %v396 = vpop.permute.xlu0 %395
      %397 = vrot.lane.b32.xlu0 %v362, 16
      %v398 = vpop.permute.xlu0 %397
      %399 = vrot.lane.b32.xlu0 %v361, 16
      %v400 = vpop.permute.xlu0 %399
      %401 = vrot.lane.b32.xlu0 %v363, 16
      %v402 = vpop.permute.xlu0 %401
      %vm403 = vcmp.lt.s32.totalorder %v373, 16
      %v404 = vsel %vm403, %v396, %v400
      %v405 = vsel %vm403, %v398, %v402
      %v406 = vsel %vm403, %v400, %v396
      %v407 = vsel %vm403, %v402, %v398
      %s408 = scalar_lea.vmem %s1, 2
      %v409 = vld [vmem:[%s408] sm:$0x3]
      %v411 = vlaneseq
      %v412 = vshrl.u32 %v411, 7
      %v413 = vsub.s32 0, %v412
      %v414 = vrot.slane %v409, %v413
      %v415 = vlaneseq
      %v416 = vshrl.u32 %v415, 7
      %v417 = vsub.s32 1, %v416
      %v418 = vrot.slane %v409, %v417
      %v421 = vmul.f32 %v406, %v414
      %v422 = vmul.f32 %v404, %v418
      %v423 = vmul.f32 %v407, %v414
      %v424 = vmul.f32 %v405, %v418
      %425 = vrot.lane.b32.xlu0 %v360, 15
      %v426 = vpop.permute.xlu0 %425
      %427 = vrot.lane.b32.xlu0 %v362, 15
      %v428 = vpop.permute.xlu0 %427
      %429 = vrot.lane.b32.xlu0 %v361, 15
      %v430 = vpop.permute.xlu0 %429
      %431 = vrot.lane.b32.xlu0 %v363, 15
      %v432 = vpop.permute.xlu0 %431
      %vm433 = vcmp.lt.s32.totalorder %v373, 15
      %v434 = vsel %vm433, %v426, %v430
      %v435 = vsel %vm433, %v428, %v432
      %v436 = vsel %vm433, %v430, %v426
      %v437 = vsel %vm433, %v432, %v428
      %s438 = scalar_lea.vmem %s1, 4
      %v439 = vld [vmem:[%s438] sm:$0x3]
      %v441 = vlaneseq
      %v442 = vshrl.u32 %v441, 7
      %v443 = vsub.s32 0, %v442
      %v444 = vrot.slane %v439, %v443
      %v445 = vlaneseq
      %v446 = vshrl.u32 %v445, 7
      %v447 = vsub.s32 1, %v446
      %v448 = vrot.slane %v439, %v447
      %v451 = vmul.f32 %v436, %v444
      %v452 = vmul.f32 %v434, %v448
      %v453 = vmul.f32 %v437, %v444
      %v454 = vmul.f32 %v435, %v448
      %455 = vrot.lane.b32.xlu0 %v360, 1
      %v456 = vpop.permute.xlu0 %455
      %457 = vrot.lane.b32.xlu0 %v362, 1
      %v458 = vpop.permute.xlu0 %457
      %459 = vrot.lane.b32.xlu0 %v361, 1
      %v460 = vpop.permute.xlu0 %459
      %461 = vrot.lane.b32.xlu0 %v363, 1
      %v462 = vpop.permute.xlu0 %461
      %vm463 = vcmp.lt.s32.totalorder %v373, 1
      %v464 = vsel %vm463, %v456, %v460
      %v465 = vsel %vm463, %v458, %v462
      %v466 = vsel %vm463, %v460, %v456
      %v467 = vsel %vm463, %v462, %v458
      %s468 = scalar_lea.vmem %s1, 6
      %v469 = vld [vmem:[%s468] sm:$0x3]
      %v471 = vlaneseq
      %v472 = vshrl.u32 %v471, 7
      %v473 = vsub.s32 0, %v472
      %v474 = vrot.slane %v469, %v473
      %v475 = vlaneseq
      %v476 = vshrl.u32 %v475, 7
      %v477 = vsub.s32 1, %v476
      %v478 = vrot.slane %v469, %v477
      %v481 = vmul.f32 %v466, %v474
      %v482 = vmul.f32 %v464, %v478
      %v483 = vmul.f32 %v467, %v474
      %v484 = vmul.f32 %v465, %v478
      %485 = vrot.lane.b32.xlu0 %v360, 127
      %v486 = vpop.permute.xlu0 %485
      %487 = vrot.lane.b32.xlu0 %v362, 127
      %v488 = vpop.permute.xlu0 %487
      %489 = vrot.lane.b32.xlu0 %v361, 127
      %v490 = vpop.permute.xlu0 %489
      %491 = vrot.lane.b32.xlu0 %v363, 127
      %v492 = vpop.permute.xlu0 %491
      %vm493 = vcmp.lt.s32.totalorder %v373, 127
      %v494 = vsel %vm493, %v486, %v490
      %v495 = vsel %vm493, %v488, %v492
      %v496 = vsel %vm493, %v490, %v486
      %v497 = vsel %vm493, %v492, %v488
      %s498 = scalar_lea.vmem %s1, 10
      %v499 = vld [vmem:[%s498] sm:$0x3]
      %v501 = vlaneseq
      %v502 = vshrl.u32 %v501, 7
      %v503 = vsub.s32 0, %v502
      %v504 = vrot.slane %v499, %v503
      %v505 = vlaneseq
      %v506 = vshrl.u32 %v505, 7
      %v507 = vsub.s32 1, %v506
      %v508 = vrot.slane %v499, %v507
      %v511 = vmul.f32 %v494, %v504
      %v512 = vmul.f32 %v496, %v508
      %v513 = vmul.f32 %v495, %v504
      %v514 = vmul.f32 %v497, %v508
      %515 = vrot.lane.b32.xlu0 %v360, 113
      %v516 = vpop.permute.xlu0 %515
      %517 = vrot.lane.b32.xlu0 %v362, 113
      %v518 = vpop.permute.xlu0 %517
      %519 = vrot.lane.b32.xlu0 %v361, 113
      %v520 = vpop.permute.xlu0 %519
      %521 = vrot.lane.b32.xlu0 %v363, 113
      %v522 = vpop.permute.xlu0 %521
      %vm523 = vcmp.lt.s32.totalorder %v373, 113
      %v524 = vsel %vm523, %v516, %v520
      %v525 = vsel %vm523, %v518, %v522
      %v526 = vsel %vm523, %v520, %v516
      %v527 = vsel %vm523, %v522, %v518
      %s528 = scalar_lea.vmem %s1, 12
      %v529 = vld [vmem:[%s528] sm:$0x3]
      %v531 = vlaneseq
      %v532 = vshrl.u32 %v531, 7
      %v533 = vsub.s32 0, %v532
      %v534 = vrot.slane %v529, %v533
      %v535 = vlaneseq
      %v536 = vshrl.u32 %v535, 7
      %v537 = vsub.s32 1, %v536
      %v538 = vrot.slane %v529, %v537
      %v541 = vmul.f32 %v524, %v534
      %v542 = vmul.f32 %v526, %v538
      %v543 = vmul.f32 %v525, %v534
      %v544 = vmul.f32 %v527, %v538
      %545 = vrot.lane.b32.xlu0 %v360, 112
      %v546 = vpop.permute.xlu0 %545
      %547 = vrot.lane.b32.xlu0 %v362, 112
      %v548 = vpop.permute.xlu0 %547
      %549 = vrot.lane.b32.xlu0 %v361, 112
      %v550 = vpop.permute.xlu0 %549
      %551 = vrot.lane.b32.xlu0 %v363, 112
      %v552 = vpop.permute.xlu0 %551
      %vm553 = vcmp.lt.s32.totalorder %v373, 112
      %v554 = vsel %vm553, %v546, %v550
      %v555 = vsel %vm553, %v548, %v552
      %v556 = vsel %vm553, %v550, %v546
      %v557 = vsel %vm553, %v552, %v548
      %s558 = scalar_lea.vmem %s1, 14
      %v559 = vld [vmem:[%s558] sm:$0x3]
      %v561 = vlaneseq
      %v562 = vshrl.u32 %v561, 7
      %v563 = vsub.s32 0, %v562
      %v564 = vrot.slane %v559, %v563
      %v565 = vlaneseq
      %v566 = vshrl.u32 %v565, 7
      %v567 = vsub.s32 1, %v566
      %v568 = vrot.slane %v559, %v567
      %v571 = vmul.f32 %v554, %v564
      %v572 = vmul.f32 %v556, %v568
      %v573 = vmul.f32 %v555, %v564
      %v574 = vmul.f32 %v557, %v568
      %575 = vrot.lane.b32.xlu0 %v360, 111
      %v576 = vpop.permute.xlu0 %575
      %577 = vrot.lane.b32.xlu0 %v362, 111
      %v578 = vpop.permute.xlu0 %577
      %579 = vrot.lane.b32.xlu0 %v361, 111
      %v580 = vpop.permute.xlu0 %579
      %581 = vrot.lane.b32.xlu0 %v363, 111
      %v582 = vpop.permute.xlu0 %581
      %vm583 = vcmp.lt.s32.totalorder %v373, 111
      %v584 = vsel %vm583, %v576, %v580
      %v585 = vsel %vm583, %v578, %v582
      %v586 = vsel %vm583, %v580, %v576
      %v587 = vsel %vm583, %v582, %v578
      %s588 = scalar_lea.vmem %s1, 16
      %v589 = vld [vmem:[%s588] sm:$0x3]
      %v591 = vlaneseq
      %v592 = vshrl.u32 %v591, 7
      %v593 = vsub.s32 0, %v592
      %v594 = vrot.slane %v589, %v593
      %v595 = vlaneseq
      %v596 = vshrl.u32 %v595, 7
      %v597 = vsub.s32 1, %v596
      %v598 = vrot.slane %v589, %v597
      %v601 = vmul.f32 %v584, %v594
      %v602 = vmul.f32 %v586, %v598
      %v603 = vmul.f32 %v585, %v594
      %v604 = vmul.f32 %v587, %v598
      %v605 = vld [vmem:[%s2] sm:$0xff]
      %v606 = vld [vmem:[%s2 + $0x8] sm:$0xff]
      %v607 = vld [vmem:[%s2 + $0x10] sm:$0xff]
      %v608 = vld [vmem:[%s2 + $0x18] sm:$0xff]
      %v609 = vld [vmem:[%s3] sm:$0xff]
      %v610 = vld [vmem:[%s3 + $0x8] sm:$0xff]
      %612 = vset.pattern.permute.xlu0 0
      %613 = vperm.xlu0 %612, %v609
      %v614 = vpop.permute.xlu0 %613
      %617 = vset.pattern.permute.xlu0 0
      %618 = vperm.xlu0 %617, %v610
      %v619 = vpop.permute.xlu0 %618
      %vm621 = vcmask 130048
      %v623 = vsel %vm621, %v606, 0
      %v626 = vsel %vm621, %v608, 0
      %628 = vmatprep.subr.mxu0 %v574
      %629 = vmatpush1.msra.mxu0 %v573
      %630 = vmatprep.subr.mxu0 %v572
      %631 = vmatpush1.msra.mxu0 %v571
      %632 = vmatprep.subr.mxu0 %v544
      %633 = vmatpush1.msra.mxu0 %v543
      %634 = vmatprep.subr.mxu0 %v542
      %635 = vmatpush1.msra.mxu0 %v541
      %636 = vmatprep.subr.mxu0 %v514
      %637 = vmatpush1.msra.mxu0 %v513
      %638 = vmatprep.subr.mxu0 %v512
      %639 = vmatpush1.msra.mxu0 %v511
      %640 = vmatprep.subr.mxu0 %v363
      %641 = vmatpush1.msra.mxu0 %v362
      %642 = vmatprep.subr.mxu0 %v361
      %643 = vmatpush1.msra.mxu0 %v360
      %644 = vmatprep.subr.mxu0 %v484
      %645 = vmatpush1.msra.mxu0 %v483
      %646 = vmatprep.subr.mxu0 %v482
      %647 = vmatpush1.msra.mxu0 %v481
      %648 = vmatprep.subr.mxu0 %v454
      %649 = vmatpush1.msra.mxu0 %v453
      %650 = vmatprep.subr.mxu0 %v452
      %651 = vmatpush1.msra.mxu0 %v451
      %652 = vmatprep.subr.mxu0 %v424
      %653 = vmatpush1.msra.mxu0 %v423
      %654 = vmatprep.subr.mxu0 %v422
      %655 = vmatpush1.msra.mxu0 %v421
      %656 = vmatprep.subr.mxu0 %v394
      %657 = vmatpush1.msra.mxu0 %v393
      %658 = vmatprep.subr.mxu0 %v392
      %659 = vmatpush1.msra.mxu0 %v391
      %660 = vmatprep.subr.mxu0 0.0
      %661 = vmatpush2.msra.mxu0 0.0
      %662 = vmatprep.subr.mxu0 0.0
      %663 = vmatpush2.msra.mxu0 0.0
      %664 = vmatprep.subr.mxu0 0.0
      %665 = vmatpush2.msra.mxu0 0.0
      %666 = vmatprep.subr.mxu0 0.0
      %667 = vmatpush2.msra.mxu0 0.0
      %668 = vmatprep.subr.mxu0 0.0
      %669 = vmatpush2.msra.mxu0 0.0
      %670 = vmatprep.subr.mxu0 0.0
      %671 = vmatpush2.msra.mxu0 0.0
      %672 = vmatprep.subr.mxu0 0.0
      %673 = vmatpush2.msra.mxu0 0.0
      %674 = vmatprep.subr.mxu0 0.0
      %675 = vmatpush2.msra.mxu0 0.0
      %676 = vmatprep.subr.mxu0 0.0
      %677 = vmatpush2.msra.mxu0 0.0
      %678 = vmatprep.subr.mxu0 0.0
      %679 = vmatpush2.msra.mxu0 0.0
      %680 = vmatprep.subr.mxu0 0.0
      %681 = vmatpush2.msra.mxu0 0.0
      %682 = vmatprep.subr.mxu0 0.0
      %683 = vmatpush2.msra.mxu0 0.0
      %684 = vmatprep.subr.mxu0 0.0
      %685 = vmatpush2.msra.mxu0 0.0
      %686 = vmatprep.subr.mxu0 0.0
      %687 = vmatpush2.msra.mxu0 0.0
      %688 = vmatprep.subr.mxu0 %v604
      %689 = vmatpush2.msra.mxu0 %v603
      %690 = vmatprep.subr.mxu0 %v602
      %691 = vmatpush2.msra.mxu0 %v601
      %692 = vmatprep.mubr.f32.mxu0 %v623
      %693 = vmatmul.mubr.f32.gmra.mxu0 %v605
      %v694 = vpop.f32.mrf.mxu0
      %v695 = vadd.f32 %v614, %v694
      %v696 = vpop.f32.mrf.mxu0
      %v697 = vadd.f32 %v614, %v696
      %698 = vmatprep.mubr.f32.mxu0 %v626
      %699 = vmatmul.mubr.f32.gmra.mxu0 %v607
      %v700 = vpop.f32.mrf.mxu0
      %v701 = vadd.f32 %v619, %v700
      %v702 = vpop.f32.mrf.mxu0
      %v703 = vadd.f32 %v619, %v702
      %704 = vdwg.mxu0
      %705 = vrot.lane.b32.xlu0 %v695, 17
      %v706 = vpop.permute.xlu0 %705
      %707 = vrot.lane.b32.xlu0 %v701, 17
      %v708 = vpop.permute.xlu0 %707
      %709 = vrot.lane.b32.xlu0 %v697, 17
      %v710 = vpop.permute.xlu0 %709
      %711 = vrot.lane.b32.xlu0 %v703, 17
      %v712 = vpop.permute.xlu0 %711
      %v713 = vsel %vm374, %v706, %v710
      %v714 = vsel %vm374, %v708, %v712
      %v715 = vsel %vm374, %v710, %v706
      %v716 = vsel %vm374, %v712, %v708
      %v717 = vmul.f32 %v715, %v384
      %v718 = vmul.f32 %v713, %v388
      %v719 = vmul.f32 %v716, %v384
      %v720 = vmul.f32 %v714, %v388
      %721 = vrot.lane.b32.xlu0 %v695, 16
      %v722 = vpop.permute.xlu0 %721
      %723 = vrot.lane.b32.xlu0 %v701, 16
      %v724 = vpop.permute.xlu0 %723
      %725 = vrot.lane.b32.xlu0 %v697, 16
      %v726 = vpop.permute.xlu0 %725
      %727 = vrot.lane.b32.xlu0 %v703, 16
      %v728 = vpop.permute.xlu0 %727
      %v729 = vsel %vm403, %v722, %v726
      %v730 = vsel %vm403, %v724, %v728
      %v731 = vsel %vm403, %v726, %v722
      %v732 = vsel %vm403, %v728, %v724
      %v733 = vmul.f32 %v731, %v414
      %v734 = vmul.f32 %v729, %v418
      %v735 = vmul.f32 %v732, %v414
      %v736 = vmul.f32 %v730, %v418
      %737 = vrot.lane.b32.xlu0 %v695, 15
      %v738 = vpop.permute.xlu0 %737
      %739 = vrot.lane.b32.xlu0 %v701, 15
      %v740 = vpop.permute.xlu0 %739
      %741 = vrot.lane.b32.xlu0 %v697, 15
      %v742 = vpop.permute.xlu0 %741
      %743 = vrot.lane.b32.xlu0 %v703, 15
      %v744 = vpop.permute.xlu0 %743
      %v745 = vsel %vm433, %v738, %v742
      %v746 = vsel %vm433, %v740, %v744
      %v747 = vsel %vm433, %v742, %v738
      %v748 = vsel %vm433, %v744, %v740
      %v749 = vmul.f32 %v747, %v444
      %v750 = vmul.f32 %v745, %v448
      %v751 = vmul.f32 %v748, %v444
      %v752 = vmul.f32 %v746, %v448
      %753 = vrot.lane.b32.xlu0 %v695, 1
      %v754 = vpop.permute.xlu0 %753
      %755 = vrot.lane.b32.xlu0 %v701, 1
      %v756 = vpop.permute.xlu0 %755
      %757 = vrot.lane.b32.xlu0 %v697, 1
      %v758 = vpop.permute.xlu0 %757
      %759 = vrot.lane.b32.xlu0 %v703, 1
      %v760 = vpop.permute.xlu0 %759
      %v761 = vsel %vm463, %v754, %v758
      %v762 = vsel %vm463, %v756, %v760
      %v763 = vsel %vm463, %v758, %v754
      %v764 = vsel %vm463, %v760, %v756
      %v765 = vmul.f32 %v763, %v474
      %v766 = vmul.f32 %v761, %v478
      %v767 = vmul.f32 %v764, %v474
      %v768 = vmul.f32 %v762, %v478
      %769 = vrot.lane.b32.xlu0 %v695, 127
      %v770 = vpop.permute.xlu0 %769
      %771 = vrot.lane.b32.xlu0 %v701, 127
      %v772 = vpop.permute.xlu0 %771
      %773 = vrot.lane.b32.xlu0 %v697, 127
      %v774 = vpop.permute.xlu0 %773
      %775 = vrot.lane.b32.xlu0 %v703, 127
      %v776 = vpop.permute.xlu0 %775
      %v777 = vsel %vm493, %v770, %v774
      %v778 = vsel %vm493, %v772, %v776
      %v779 = vsel %vm493, %v774, %v770
      %v780 = vsel %vm493, %v776, %v772
      %v781 = vmul.f32 %v777, %v504
      %v782 = vmul.f32 %v779, %v508
      %v783 = vmul.f32 %v778, %v504
      %v784 = vmul.f32 %v780, %v508
      %785 = vrot.lane.b32.xlu0 %v695, 113
      %v786 = vpop.permute.xlu0 %785
      %787 = vrot.lane.b32.xlu0 %v701, 113
      %v788 = vpop.permute.xlu0 %787
      %789 = vrot.lane.b32.xlu0 %v697, 113
      %v790 = vpop.permute.xlu0 %789
      %791 = vrot.lane.b32.xlu0 %v703, 113
      %v792 = vpop.permute.xlu0 %791
      %v793 = vsel %vm523, %v786, %v790
      %v794 = vsel %vm523, %v788, %v792
      %v795 = vsel %vm523, %v790, %v786
      %v796 = vsel %vm523, %v792, %v788
      %v797 = vmul.f32 %v793, %v534
      %v798 = vmul.f32 %v795, %v538
      %v799 = vmul.f32 %v794, %v534
      %v800 = vmul.f32 %v796, %v538
      %801 = vrot.lane.b32.xlu0 %v695, 112
      %v802 = vpop.permute.xlu0 %801
      %803 = vrot.lane.b32.xlu0 %v701, 112
      %v804 = vpop.permute.xlu0 %803
      %805 = vrot.lane.b32.xlu0 %v697, 112
      %v806 = vpop.permute.xlu0 %805
      %807 = vrot.lane.b32.xlu0 %v703, 112
      %v808 = vpop.permute.xlu0 %807
      %v809 = vsel %vm553, %v802, %v806
      %v810 = vsel %vm553, %v804, %v808
      %v811 = vsel %vm553, %v806, %v802
      %v812 = vsel %vm553, %v808, %v804
      %v813 = vmul.f32 %v809, %v564
      %v814 = vmul.f32 %v811, %v568
      %v815 = vmul.f32 %v810, %v564
      %v816 = vmul.f32 %v812, %v568
      %817 = vrot.lane.b32.xlu0 %v695, 111
      %v818 = vpop.permute.xlu0 %817
      %819 = vrot.lane.b32.xlu0 %v701, 111
      %v820 = vpop.permute.xlu0 %819
      %821 = vrot.lane.b32.xlu0 %v697, 111
      %v822 = vpop.permute.xlu0 %821
      %823 = vrot.lane.b32.xlu0 %v703, 111
      %v824 = vpop.permute.xlu0 %823
      %v825 = vsel %vm583, %v818, %v822
      %v826 = vsel %vm583, %v820, %v824
      %v827 = vsel %vm583, %v822, %v818
      %v828 = vsel %vm583, %v824, %v820
      %v829 = vmul.f32 %v825, %v594
      %v830 = vmul.f32 %v827, %v598
      %v831 = vmul.f32 %v826, %v594
      %v832 = vmul.f32 %v828, %v598
      %v833 = vld [vmem:[%s4] sm:$0xff]
      %v834 = vld [vmem:[%s4 + $0x8] sm:$0xff]
      %v835 = vld [vmem:[%s4 + $0x10] sm:$0xff]
      %v836 = vld [vmem:[%s4 + $0x18] sm:$0xff]
      %v837 = vld [vmem:[%s5] sm:$0xff]
      %v838 = vld [vmem:[%s5 + $0x8] sm:$0xff]
      %840 = vset.pattern.permute.xlu0 0
      %841 = vperm.xlu0 %840, %v837
      %v842 = vpop.permute.xlu0 %841
      %845 = vset.pattern.permute.xlu0 0
      %846 = vperm.xlu0 %845, %v838
      %v847 = vpop.permute.xlu0 %846
      %v850 = vsel %vm621, %v834, 0
      %v853 = vsel %vm621, %v836, 0
      %855 = vmatprep.subr.mxu0 %v816
      %856 = vmatpush1.msra.mxu0 %v815
      %857 = vmatprep.subr.mxu0 %v814
      %858 = vmatpush1.msra.mxu0 %v813
      %859 = vmatprep.subr.mxu0 %v800
      %860 = vmatpush1.msra.mxu0 %v799
      %861 = vmatprep.subr.mxu0 %v798
      %862 = vmatpush1.msra.mxu0 %v797
      %863 = vmatprep.subr.mxu0 %v784
      %864 = vmatpush1.msra.mxu0 %v783
      %865 = vmatprep.subr.mxu0 %v782
      %866 = vmatpush1.msra.mxu0 %v781
      %867 = vmatprep.subr.mxu0 %v703
      %868 = vmatpush1.msra.mxu0 %v701
      %869 = vmatprep.subr.mxu0 %v697
      %870 = vmatpush1.msra.mxu0 %v695
      %871 = vmatprep.subr.mxu0 %v768
      %872 = vmatpush1.msra.mxu0 %v767
      %873 = vmatprep.subr.mxu0 %v766
      %874 = vmatpush1.msra.mxu0 %v765
      %875 = vmatprep.subr.mxu0 %v752
      %876 = vmatpush1.msra.mxu0 %v751
      %877 = vmatprep.subr.mxu0 %v750
      %878 = vmatpush1.msra.mxu0 %v749
      %879 = vmatprep.subr.mxu0 %v736
      %880 = vmatpush1.msra.mxu0 %v735
      %881 = vmatprep.subr.mxu0 %v734
      %882 = vmatpush1.msra.mxu0 %v733
      %883 = vmatprep.subr.mxu0 %v720
      %884 = vmatpush1.msra.mxu0 %v719
      %885 = vmatprep.subr.mxu0 %v718
      %886 = vmatpush1.msra.mxu0 %v717
      %887 = vmatprep.subr.mxu0 0.0
      %888 = vmatpush2.msra.mxu0 0.0
      %889 = vmatprep.subr.mxu0 0.0
      %890 = vmatpush2.msra.mxu0 0.0
      %891 = vmatprep.subr.mxu0 0.0
      %892 = vmatpush2.msra.mxu0 0.0
      %893 = vmatprep.subr.mxu0 0.0
      %894 = vmatpush2.msra.mxu0 0.0
      %895 = vmatprep.subr.mxu0 0.0
      %896 = vmatpush2.msra.mxu0 0.0
      %897 = vmatprep.subr.mxu0 0.0
      %898 = vmatpush2.msra.mxu0 0.0
      %899 = vmatprep.subr.mxu0 0.0
      %900 = vmatpush2.msra.mxu0 0.0
      %901 = vmatprep.subr.mxu0 0.0
      %902 = vmatpush2.msra.mxu0 0.0
      %903 = vmatprep.subr.mxu0 0.0
      %904 = vmatpush2.msra.mxu0 0.0
      %905 = vmatprep.subr.mxu0 0.0
      %906 = vmatpush2.msra.mxu0 0.0
      %907 = vmatprep.subr.mxu0 0.0
      %908 = vmatpush2.msra.mxu0 0.0
      %909 = vmatprep.subr.mxu0 0.0
      %910 = vmatpush2.msra.mxu0 0.0
      %911 = vmatprep.subr.mxu0 0.0
      %912 = vmatpush2.msra.mxu0 0.0
      %913 = vmatprep.subr.mxu0 0.0
      %914 = vmatpush2.msra.mxu0 0.0
      %915 = vmatprep.subr.mxu0 %v832
      %916 = vmatpush2.msra.mxu0 %v831
      %917 = vmatprep.subr.mxu0 %v830
      %918 = vmatpush2.msra.mxu0 %v829
      %919 = vmatprep.mubr.f32.mxu0 %v850
      %920 = vmatmul.mubr.f32.gmra.mxu0 %v833
      %v921 = vpop.f32.mrf.mxu0
      %v922 = vadd.f32 %v842, %v921
      %v923 = vpop.f32.mrf.mxu0
      %v924 = vadd.f32 %v842, %v923
      %925 = vmatprep.mubr.f32.mxu0 %v853
      %926 = vmatmul.mubr.f32.gmra.mxu0 %v835
      %v927 = vpop.f32.mrf.mxu0
      %v928 = vadd.f32 %v847, %v927
      %v929 = vpop.f32.mrf.mxu0
      %v930 = vadd.f32 %v847, %v929
      %931 = vdwg.mxu0
      %v932 = vmax.f32 %v922, 0.0
      %v933 = vmax.f32 %v924, 0.0
      %v934 = vmax.f32 %v928, 0.0
      %v935 = vmax.f32 %v930, 0.0
      %936 = vrot.lane.b32.xlu0 %v932, 17
      %v937 = vpop.permute.xlu0 %936
      %938 = vrot.lane.b32.xlu0 %v934, 17
      %v939 = vpop.permute.xlu0 %938
      %940 = vrot.lane.b32.xlu0 %v933, 17
      %v941 = vpop.permute.xlu0 %940
      %942 = vrot.lane.b32.xlu0 %v935, 17
      %v943 = vpop.permute.xlu0 %942
      %v944 = vsel %vm374, %v937, %v941
      %v945 = vsel %vm374, %v939, %v943
      %v946 = vsel %vm374, %v941, %v937
      %v947 = vsel %vm374, %v943, %v939
      %v948 = vmul.f32 %v946, %v384
      %v949 = vmul.f32 %v944, %v388
      %v950 = vmul.f32 %v947, %v384
      %v951 = vmul.f32 %v945, %v388
      %952 = vrot.lane.b32.xlu0 %v932, 16
      %v953 = vpop.permute.xlu0 %952
      %954 = vrot.lane.b32.xlu0 %v934, 16
      %v955 = vpop.permute.xlu0 %954
      %956 = vrot.lane.b32.xlu0 %v933, 16
      %v957 = vpop.permute.xlu0 %956
      %958 = vrot.lane.b32.xlu0 %v935, 16
      %v959 = vpop.permute.xlu0 %958
      %v960 = vsel %vm403, %v953, %v957
      %v961 = vsel %vm403, %v955, %v959
      %v962 = vsel %vm403, %v957, %v953
      %v963 = vsel %vm403, %v959, %v955
      %v964 = vmul.f32 %v962, %v414
      %v965 = vmul.f32 %v960, %v418
      %v966 = vmul.f32 %v963, %v414
      %v967 = vmul.f32 %v961, %v418
      %968 = vrot.lane.b32.xlu0 %v932, 15
      %v969 = vpop.permute.xlu0 %968
      %970 = vrot.lane.b32.xlu0 %v934, 15
      %v971 = vpop.permute.xlu0 %970
      %972 = vrot.lane.b32.xlu0 %v933, 15
      %v973 = vpop.permute.xlu0 %972
      %974 = vrot.lane.b32.xlu0 %v935, 15
      %v975 = vpop.permute.xlu0 %974
      %v976 = vsel %vm433, %v969, %v973
      %v977 = vsel %vm433, %v971, %v975
      %v978 = vsel %vm433, %v973, %v969
      %v979 = vsel %vm433, %v975, %v971
      %v980 = vmul.f32 %v978, %v444
      %v981 = vmul.f32 %v976, %v448
      %v982 = vmul.f32 %v979, %v444
      %v983 = vmul.f32 %v977, %v448
      %984 = vrot.lane.b32.xlu0 %v932, 1
      %v985 = vpop.permute.xlu0 %984
      %986 = vrot.lane.b32.xlu0 %v934, 1
      %v987 = vpop.permute.xlu0 %986
      %988 = vrot.lane.b32.xlu0 %v933, 1
      %v989 = vpop.permute.xlu0 %988
      %990 = vrot.lane.b32.xlu0 %v935, 1
      %v991 = vpop.permute.xlu0 %990
      %v992 = vsel %vm463, %v985, %v989
      %v993 = vsel %vm463, %v987, %v991
      %v994 = vsel %vm463, %v989, %v985
      %v995 = vsel %vm463, %v991, %v987
      %v996 = vmul.f32 %v994, %v474
      %v997 = vmul.f32 %v992, %v478
      %v998 = vmul.f32 %v995, %v474
      %v999 = vmul.f32 %v993, %v478
      %1000 = vrot.lane.b32.xlu0 %v932, 127
      %v1001 = vpop.permute.xlu0 %1000
      %1002 = vrot.lane.b32.xlu0 %v934, 127
      %v1003 = vpop.permute.xlu0 %1002
      %1004 = vrot.lane.b32.xlu0 %v933, 127
      %v1005 = vpop.permute.xlu0 %1004
      %1006 = vrot.lane.b32.xlu0 %v935, 127
      %v1007 = vpop.permute.xlu0 %1006
      %v1008 = vsel %vm493, %v1001, %v1005
      %v1009 = vsel %vm493, %v1003, %v1007
      %v1010 = vsel %vm493, %v1005, %v1001
      %v1011 = vsel %vm493, %v1007, %v1003
      %v1012 = vmul.f32 %v1008, %v504
      %v1013 = vmul.f32 %v1010, %v508
      %v1014 = vmul.f32 %v1009, %v504
      %v1015 = vmul.f32 %v1011, %v508
      %1016 = vrot.lane.b32.xlu0 %v932, 113
      %v1017 = vpop.permute.xlu0 %1016
      %1018 = vrot.lane.b32.xlu0 %v934, 113
      %v1019 = vpop.permute.xlu0 %1018
      %1020 = vrot.lane.b32.xlu0 %v933, 113
      %v1021 = vpop.permute.xlu0 %1020
      %1022 = vrot.lane.b32.xlu0 %v935, 113
      %v1023 = vpop.permute.xlu0 %1022
      %v1024 = vsel %vm523, %v1017, %v1021
      %v1025 = vsel %vm523, %v1019, %v1023
      %v1026 = vsel %vm523, %v1021, %v1017
      %v1027 = vsel %vm523, %v1023, %v1019
      %v1028 = vmul.f32 %v1024, %v534
      %v1029 = vmul.f32 %v1026, %v538
      %v1030 = vmul.f32 %v1025, %v534
      %v1031 = vmul.f32 %v1027, %v538
      %1032 = vrot.lane.b32.xlu0 %v932, 112
      %v1033 = vpop.permute.xlu0 %1032
      %1034 = vrot.lane.b32.xlu0 %v934, 112
      %v1035 = vpop.permute.xlu0 %1034
      %1036 = vrot.lane.b32.xlu0 %v933, 112
      %v1037 = vpop.permute.xlu0 %1036
      %1038 = vrot.lane.b32.xlu0 %v935, 112
      %v1039 = vpop.permute.xlu0 %1038
      %v1040 = vsel %vm553, %v1033, %v1037
      %v1041 = vsel %vm553, %v1035, %v1039
      %v1042 = vsel %vm553, %v1037, %v1033
      %v1043 = vsel %vm553, %v1039, %v1035
      %v1044 = vmul.f32 %v1040, %v564
      %v1045 = vmul.f32 %v1042, %v568
      %v1046 = vmul.f32 %v1041, %v564
      %v1047 = vmul.f32 %v1043, %v568
      %1048 = vrot.lane.b32.xlu0 %v932, 111
      %v1049 = vpop.permute.xlu0 %1048
      %1050 = vrot.lane.b32.xlu0 %v934, 111
      %v1051 = vpop.permute.xlu0 %1050
      %1052 = vrot.lane.b32.xlu0 %v933, 111
      %v1053 = vpop.permute.xlu0 %1052
      %1054 = vrot.lane.b32.xlu0 %v935, 111
      %v1055 = vpop.permute.xlu0 %1054
      %v1056 = vsel %vm583, %v1049, %v1053
      %v1057 = vsel %vm583, %v1051, %v1055
      %v1058 = vsel %vm583, %v1053, %v1049
      %v1059 = vsel %vm583, %v1055, %v1051
      %v1060 = vmul.f32 %v1056, %v594
      %v1061 = vmul.f32 %v1058, %v598
      %v1062 = vmul.f32 %v1057, %v594
      %v1063 = vmul.f32 %v1059, %v598
      %v1064 = vld [vmem:[%s6] sm:$0xff]
      %v1065 = vld [vmem:[%s6 + $0x8] sm:$0xff]
      %v1066 = vld [vmem:[%s6 + $0x10] sm:$0xff]
      %v1067 = vld [vmem:[%s6 + $0x18] sm:$0xff]
      %v1068 = vld [vmem:[%s7] sm:$0xff]
      %v1069 = vld [vmem:[%s7 + $0x8] sm:$0xff]
      %1071 = vset.pattern.permute.xlu0 0
      %1072 = vperm.xlu0 %1071, %v1068
      %v1073 = vpop.permute.xlu0 %1072
      %1076 = vset.pattern.permute.xlu0 0
      %1077 = vperm.xlu0 %1076, %v1069
      %v1078 = vpop.permute.xlu0 %1077
      %v1081 = vsel %vm621, %v1065, 0
      %v1084 = vsel %vm621, %v1067, 0
      %1086 = vmatprep.subr.mxu0 %v1047
      %1087 = vmatpush1.msra.mxu0 %v1046
      %1088 = vmatprep.subr.mxu0 %v1045
      %1089 = vmatpush1.msra.mxu0 %v1044
      %1090 = vmatprep.subr.mxu0 %v1031
      %1091 = vmatpush1.msra.mxu0 %v1030
      %1092 = vmatprep.subr.mxu0 %v1029
      %1093 = vmatpush1.msra.mxu0 %v1028
      %1094 = vmatprep.subr.mxu0 %v1015
      %1095 = vmatpush1.msra.mxu0 %v1014
      %1096 = vmatprep.subr.mxu0 %v1013
      %1097 = vmatpush1.msra.mxu0 %v1012
      %1098 = vmatprep.subr.mxu0 %v935
      %1099 = vmatpush1.msra.mxu0 %v934
      %1100 = vmatprep.subr.mxu0 %v933
      %1101 = vmatpush1.msra.mxu0 %v932
      %1102 = vmatprep.subr.mxu0 %v999
      %1103 = vmatpush1.msra.mxu0 %v998
      %1104 = vmatprep.subr.mxu0 %v997
      %1105 = vmatpush1.msra.mxu0 %v996
      %1106 = vmatprep.subr.mxu0 %v983
      %1107 = vmatpush1.msra.mxu0 %v982
      %1108 = vmatprep.subr.mxu0 %v981
      %1109 = vmatpush1.msra.mxu0 %v980
      %1110 = vmatprep.subr.mxu0 %v967
      %1111 = vmatpush1.msra.mxu0 %v966
      %1112 = vmatprep.subr.mxu0 %v965
      %1113 = vmatpush1.msra.mxu0 %v964
      %1114 = vmatprep.subr.mxu0 %v951
      %1115 = vmatpush1.msra.mxu0 %v950
      %1116 = vmatprep.subr.mxu0 %v949
      %1117 = vmatpush1.msra.mxu0 %v948
      %1118 = vmatprep.subr.mxu0 0.0
      %1119 = vmatpush2.msra.mxu0 0.0
      %1120 = vmatprep.subr.mxu0 0.0
      %1121 = vmatpush2.msra.mxu0 0.0
      %1122 = vmatprep.subr.mxu0 0.0
      %1123 = vmatpush2.msra.mxu0 0.0
      %1124 = vmatprep.subr.mxu0 0.0
      %1125 = vmatpush2.msra.mxu0 0.0
      %1126 = vmatprep.subr.mxu0 0.0
      %1127 = vmatpush2.msra.mxu0 0.0
      %1128 = vmatprep.subr.mxu0 0.0
      %1129 = vmatpush2.msra.mxu0 0.0
      %1130 = vmatprep.subr.mxu0 0.0
      %1131 = vmatpush2.msra.mxu0 0.0
      %1132 = vmatprep.subr.mxu0 0.0
      %1133 = vmatpush2.msra.mxu0 0.0
      %1134 = vmatprep.subr.mxu0 0.0
      %1135 = vmatpush2.msra.mxu0 0.0
      %1136 = vmatprep.subr.mxu0 0.0
      %1137 = vmatpush2.msra.mxu0 0.0
      %1138 = vmatprep.subr.mxu0 0.0
      %1139 = vmatpush2.msra.mxu0 0.0
      %1140 = vmatprep.subr.mxu0 0.0
      %1141 = vmatpush2.msra.mxu0 0.0
      %1142 = vmatprep.subr.mxu0 0.0
      %1143 = vmatpush2.msra.mxu0 0.0
      %1144 = vmatprep.subr.mxu0 0.0
      %1145 = vmatpush2.msra.mxu0 0.0
      %1146 = vmatprep.subr.mxu0 %v1063
      %1147 = vmatpush2.msra.mxu0 %v1062
      %1148 = vmatprep.subr.mxu0 %v1061
      %1149 = vmatpush2.msra.mxu0 %v1060
      %1150 = vmatprep.mubr.f32.mxu0 %v1081
      %1151 = vmatmul.mubr.f32.gmra.mxu0 %v1064
      %v1152 = vpop.f32.mrf.mxu0
      %v1153 = vadd.f32 %v1073, %v1152
      %v1154 = vpop.f32.mrf.mxu0
      %v1155 = vadd.f32 %v1073, %v1154
      %1156 = vmatprep.mubr.f32.mxu0 %v1084
      %1157 = vmatmul.mubr.f32.gmra.mxu0 %v1066
      %v1158 = vpop.f32.mrf.mxu0
      %v1159 = vadd.f32 %v1078, %v1158
      %v1160 = vpop.f32.mrf.mxu0
      %v1161 = vadd.f32 %v1078, %v1160
      %1162 = vdwg.mxu0
      %v1163 = vadd.f32 %v1153, %v695
      %v1164 = vadd.f32 %v1155, %v697
      %v1165 = vadd.f32 %v1159, %v701
      %v1166 = vadd.f32 %v1161, %v703
      %1167 = vrot.lane.b32.xlu0 %v1163, 17
      %v1168 = vpop.permute.xlu0 %1167
      %1169 = vrot.lane.b32.xlu0 %v1165, 17
      %v1170 = vpop.permute.xlu0 %1169
      %1171 = vrot.lane.b32.xlu0 %v1164, 17
      %v1172 = vpop.permute.xlu0 %1171
      %1173 = vrot.lane.b32.xlu0 %v1166, 17
      %v1174 = vpop.permute.xlu0 %1173
      %v1175 = vsel %vm374, %v1168, %v1172
      %v1176 = vsel %vm374, %v1170, %v1174
      %v1177 = vsel %vm374, %v1172, %v1168
      %v1178 = vsel %vm374, %v1174, %v1170
      %v1179 = vmul.f32 %v1177, %v384
      %v1180 = vmul.f32 %v1175, %v388
      %v1181 = vmul.f32 %v1178, %v384
      %v1182 = vmul.f32 %v1176, %v388
      %1183 = vrot.lane.b32.xlu0 %v1163, 16
      %v1184 = vpop.permute.xlu0 %1183
      %1185 = vrot.lane.b32.xlu0 %v1165, 16
      %v1186 = vpop.permute.xlu0 %1185
      %1187 = vrot.lane.b32.xlu0 %v1164, 16
      %v1188 = vpop.permute.xlu0 %1187
      %1189 = vrot.lane.b32.xlu0 %v1166, 16
      %v1190 = vpop.permute.xlu0 %1189
      %v1191 = vsel %vm403, %v1184, %v1188
      %v1192 = vsel %vm403, %v1186, %v1190
      %v1193 = vsel %vm403, %v1188, %v1184
      %v1194 = vsel %vm403, %v1190, %v1186
      %v1195 = vmul.f32 %v1193, %v414
      %v1196 = vmul.f32 %v1191, %v418
      %v1197 = vmul.f32 %v1194, %v414
      %v1198 = vmul.f32 %v1192, %v418
      %1199 = vrot.lane.b32.xlu0 %v1163, 15
      %v1200 = vpop.permute.xlu0 %1199
      %1201 = vrot.lane.b32.xlu0 %v1165, 15
      %v1202 = vpop.permute.xlu0 %1201
      %1203 = vrot.lane.b32.xlu0 %v1164, 15
      %v1204 = vpop.permute.xlu0 %1203
      %1205 = vrot.lane.b32.xlu0 %v1166, 15
      %v1206 = vpop.permute.xlu0 %1205
      %v1207 = vsel %vm433, %v1200, %v1204
      %v1208 = vsel %vm433, %v1202, %v1206
      %v1209 = vsel %vm433, %v1204, %v1200
      %v1210 = vsel %vm433, %v1206, %v1202
      %v1211 = vmul.f32 %v1209, %v444
      %v1212 = vmul.f32 %v1207, %v448
      %v1213 = vmul.f32 %v1210, %v444
      %v1214 = vmul.f32 %v1208, %v448
      %1215 = vrot.lane.b32.xlu0 %v1163, 1
      %v1216 = vpop.permute.xlu0 %1215
      %1217 = vrot.lane.b32.xlu0 %v1165, 1
      %v1218 = vpop.permute.xlu0 %1217
      %1219 = vrot.lane.b32.xlu0 %v1164, 1
      %v1220 = vpop.permute.xlu0 %1219
      %1221 = vrot.lane.b32.xlu0 %v1166, 1
      %v1222 = vpop.permute.xlu0 %1221
      %v1223 = vsel %vm463, %v1216, %v1220
      %v1224 = vsel %vm463, %v1218, %v1222
      %v1225 = vsel %vm463, %v1220, %v1216
      %v1226 = vsel %vm463, %v1222, %v1218
      %v1227 = vmul.f32 %v1225, %v474
      %v1228 = vmul.f32 %v1223, %v478
      %v1229 = vmul.f32 %v1226, %v474
      %v1230 = vmul.f32 %v1224, %v478
      %1231 = vrot.lane.b32.xlu0 %v1163, 127
      %v1232 = vpop.permute.xlu0 %1231
      %1233 = vrot.lane.b32.xlu0 %v1165, 127
      %v1234 = vpop.permute.xlu0 %1233
      %1235 = vrot.lane.b32.xlu0 %v1164, 127
      %v1236 = vpop.permute.xlu0 %1235
      %1237 = vrot.lane.b32.xlu0 %v1166, 127
      %v1238 = vpop.permute.xlu0 %1237
      %v1239 = vsel %vm493, %v1232, %v1236
      %v1240 = vsel %vm493, %v1234, %v1238
      %v1241 = vsel %vm493, %v1236, %v1232
      %v1242 = vsel %vm493, %v1238, %v1234
      %v1243 = vmul.f32 %v1239, %v504
      %v1244 = vmul.f32 %v1241, %v508
      %v1245 = vmul.f32 %v1240, %v504
      %v1246 = vmul.f32 %v1242, %v508
      %1247 = vrot.lane.b32.xlu0 %v1163, 113
      %v1248 = vpop.permute.xlu0 %1247
      %1249 = vrot.lane.b32.xlu0 %v1165, 113
      %v1250 = vpop.permute.xlu0 %1249
      %1251 = vrot.lane.b32.xlu0 %v1164, 113
      %v1252 = vpop.permute.xlu0 %1251
      %1253 = vrot.lane.b32.xlu0 %v1166, 113
      %v1254 = vpop.permute.xlu0 %1253
      %v1255 = vsel %vm523, %v1248, %v1252
      %v1256 = vsel %vm523, %v1250, %v1254
      %v1257 = vsel %vm523, %v1252, %v1248
      %v1258 = vsel %vm523, %v1254, %v1250
      %v1259 = vmul.f32 %v1255, %v534
      %v1260 = vmul.f32 %v1257, %v538
      %v1261 = vmul.f32 %v1256, %v534
      %v1262 = vmul.f32 %v1258, %v538
      %1263 = vrot.lane.b32.xlu0 %v1163, 112
      %v1264 = vpop.permute.xlu0 %1263
      %1265 = vrot.lane.b32.xlu0 %v1165, 112
      %v1266 = vpop.permute.xlu0 %1265
      %1267 = vrot.lane.b32.xlu0 %v1164, 112
      %v1268 = vpop.permute.xlu0 %1267
      %1269 = vrot.lane.b32.xlu0 %v1166, 112
      %v1270 = vpop.permute.xlu0 %1269
      %v1271 = vsel %vm553, %v1264, %v1268
      %v1272 = vsel %vm553, %v1266, %v1270
      %v1273 = vsel %vm553, %v1268, %v1264
      %v1274 = vsel %vm553, %v1270, %v1266
      %v1275 = vmul.f32 %v1271, %v564
      %v1276 = vmul.f32 %v1273, %v568
      %v1277 = vmul.f32 %v1272, %v564
      %v1278 = vmul.f32 %v1274, %v568
      %1279 = vrot.lane.b32.xlu0 %v1163, 111
      %v1280 = vpop.permute.xlu0 %1279
      %1281 = vrot.lane.b32.xlu0 %v1165, 111
      %v1282 = vpop.permute.xlu0 %1281
      %1283 = vrot.lane.b32.xlu0 %v1164, 111
      %v1284 = vpop.permute.xlu0 %1283
      %1285 = vrot.lane.b32.xlu0 %v1166, 111
      %v1286 = vpop.permute.xlu0 %1285
      %v1287 = vsel %vm583, %v1280, %v1284
      %v1288 = vsel %vm583, %v1282, %v1286
      %v1289 = vsel %vm583, %v1284, %v1280
      %v1290 = vsel %vm583, %v1286, %v1282
      %v1291 = vmul.f32 %v1287, %v594
      %v1292 = vmul.f32 %v1289, %v598
      %v1293 = vmul.f32 %v1288, %v594
      %v1294 = vmul.f32 %v1290, %v598
      %v1295 = vld [vmem:[%s8] sm:$0x77]
      %v1296 = vld [vmem:[%s9] sm:$0x7]
      %1298 = vset.pattern.permute.xlu0 0
      %1299 = vperm.xlu0 %1298, %v1296
      %v1300 = vpop.permute.xlu0 %1299
      %v1303 = vcombine.high %v1295, %v1295
      %v1304 = vsel %vm621, %v1303, 0
      %1306 = vmatprep.subr.mxu0 %v1278
      %1307 = vmatpush1.msra.mxu0 %v1277
      %1308 = vmatprep.subr.mxu0 %v1276
      %1309 = vmatpush1.msra.mxu0 %v1275
      %1310 = vmatprep.subr.mxu0 %v1262
      %1311 = vmatpush1.msra.mxu0 %v1261
      %1312 = vmatprep.subr.mxu0 %v1260
      %1313 = vmatpush1.msra.mxu0 %v1259
      %1314 = vmatprep.subr.mxu0 %v1246
      %1315 = vmatpush1.msra.mxu0 %v1245
      %1316 = vmatprep.subr.mxu0 %v1244
      %1317 = vmatpush1.msra.mxu0 %v1243
      %1318 = vmatprep.subr.mxu0 %v1166
      %1319 = vmatpush1.msra.mxu0 %v1165
      %1320 = vmatprep.subr.mxu0 %v1164
      %1321 = vmatpush1.msra.mxu0 %v1163
      %1322 = vmatprep.subr.mxu0 %v1230
      %1323 = vmatpush1.msra.mxu0 %v1229
      %1324 = vmatprep.subr.mxu0 %v1228
      %1325 = vmatpush1.msra.mxu0 %v1227
      %1326 = vmatprep.subr.mxu0 %v1214
      %1327 = vmatpush1.msra.mxu0 %v1213
      %1328 = vmatprep.subr.mxu0 %v1212
      %1329 = vmatpush1.msra.mxu0 %v1211
      %1330 = vmatprep.subr.mxu0 %v1198
      %1331 = vmatpush1.msra.mxu0 %v1197
      %1332 = vmatprep.subr.mxu0 %v1196
      %1333 = vmatpush1.msra.mxu0 %v1195
      %1334 = vmatprep.subr.mxu0 %v1182
      %1335 = vmatpush1.msra.mxu0 %v1181
      %1336 = vmatprep.subr.mxu0 %v1180
      %1337 = vmatpush1.msra.mxu0 %v1179
      %1338 = vmatprep.subr.mxu0 0.0
      %1339 = vmatpush2.msra.mxu0 0.0
      %1340 = vmatprep.subr.mxu0 0.0
      %1341 = vmatpush2.msra.mxu0 0.0
      %1342 = vmatprep.subr.mxu0 0.0
      %1343 = vmatpush2.msra.mxu0 0.0
      %1344 = vmatprep.subr.mxu0 0.0
      %1345 = vmatpush2.msra.mxu0 0.0
      %1346 = vmatprep.subr.mxu0 0.0
      %1347 = vmatpush2.msra.mxu0 0.0
      %1348 = vmatprep.subr.mxu0 0.0
      %1349 = vmatpush2.msra.mxu0 0.0
      %1350 = vmatprep.subr.mxu0 0.0
      %1351 = vmatpush2.msra.mxu0 0.0
      %1352 = vmatprep.subr.mxu0 0.0
      %1353 = vmatpush2.msra.mxu0 0.0
      %1354 = vmatprep.subr.mxu0 0.0
      %1355 = vmatpush2.msra.mxu0 0.0
      %1356 = vmatprep.subr.mxu0 0.0
      %1357 = vmatpush2.msra.mxu0 0.0
      %1358 = vmatprep.subr.mxu0 0.0
      %1359 = vmatpush2.msra.mxu0 0.0
      %1360 = vmatprep.subr.mxu0 0.0
      %1361 = vmatpush2.msra.mxu0 0.0
      %1362 = vmatprep.subr.mxu0 0.0
      %1363 = vmatpush2.msra.mxu0 0.0
      %1364 = vmatprep.subr.mxu0 0.0
      %1365 = vmatpush2.msra.mxu0 0.0
      %1366 = vmatprep.subr.mxu0 %v1294
      %1367 = vmatpush2.msra.mxu0 %v1293
      %1368 = vmatprep.subr.mxu0 %v1292
      %1369 = vmatpush2.msra.mxu0 %v1291
      %1370 = vmatprep.mubr.f32.mxu0 %v1304
      %1371 = vmatmul.mubr.f32.gmra.mxu0 %v1295
      %v1372 = vpop.f32.mrf.mxu0
      %v1373 = vadd.f32 %v1300, %v1372
      %v1374 = vpop.f32.mrf.mxu0
      %v1375 = vadd.f32 %v1300, %v1374
      %1376 = vdwg.mxu0
      %v1379 = vcombine.low %v1373, %v1375
      %1381 = vst [vmem:[%s359] sm:$0x77] %v1379
      %p1382 = scmp.lt.s32.totalorder %s21, 1
      %s1383 = scalar_select %p1382, %s21, 1
      %s1384 = smul.addr %s1383, 2
      %s1385 = smul.addr %s1384, 4
      %s1386 = scalar_lea.vmem %s10, %s1385
      // Predicated region
      $region61: #{reconstruct_forward.1} parent=59 // pred_check
        %p1387 = pneg %p254
      $region62: #{reconstruct_forward.1} parent=59 // pred_check_branch
        %1389 = sbr.rel (%p1387) target = $region64
      $region63: #{reconstruct_forward.1} parent=59 // pred_region
        _
      $region64: #{reconstruct_forward.1} parent=59 // pred_fallthru
        _
    $region60: #{reconstruct_forward.1} parent=5 // pred_fallthru
      _
    %p1390 = scmp.le.s32.totalorder 2, %s16
    // Predicated region
    $region65: #{reconstruct_forward.1} parent=5 // pred_check
      %p1391 = pneg %p1390
    $region66: #{reconstruct_forward.1} parent=5 // pred_check_branch
      %1393 = sbr.rel (%p1391) target = $region68
    $region67: #{reconstruct_forward.1} parent=5 // pred_region
      %s1394 = ssub.s32 %s16, 2
      // Predicated region
      $region69: #{reconstruct_forward.1} parent=67 // pred_check
        %p1395 = pneg %p260
      $region70: #{reconstruct_forward.1} parent=67 // pred_check_branch
        %1397 = sbr.rel (%p1395) target = $region72
      $region71: #{reconstruct_forward.1} parent=67 // pred_region
        %p1398 = scmp.lt.s32.totalorder %s22, 1
        %s1399 = scalar_select %p1398, %s22, 1
        %s1400 = smul.addr %s1399, 2
        %s1401 = smul.addr %s1400, 4
        %s1402 = scalar_lea.vmem %s10, %s1401
      $region72: #{reconstruct_forward.1} parent=67 // pred_fallthru
        _
    $region68: #{reconstruct_forward.1} parent=5 // pred_fallthru
      _
  $region6: #{reconstruct_forward.1} parent=0 // loop_footer
    %s20 = sadd.s32 1, %s16
  $region7: #{reconstruct_forward.1} parent=0 // loop_footer_branch
    %15 = sbr.rel target = $region3
  $region8: #{reconstruct_forward.1} parent=0 // loop_exit
    _

</llo_original>
